<compile_context>
chip_gen: v5e
topology: v5e:2x2
jax: 0.10.0
libtpu: 0.0.40
codegen_flags: <defaults>
</compile_context>

<pallas_src>
import functools

import jax
import jax.numpy as jnp
from jax.experimental import pallas as pl
from jax.experimental.pallas import tpu as pltpu


# ------------------------------ kernel body ---------------------------------
def _distill_kernel(pred_ref, tt_ref, tgt_ref, cw_ref, out_ref, acc_ref, *rest,
                    n_timesteps, batch_pad, joints, lam, alpha,
                    hw_valid, hw_tile, mask_cols, need_softmax, stage_targets):
    """One grid step = one HW lane tile.  The (small, static) time loop is fully
    unrolled; the joint loop is streamed in (B_pad, hw_tile) chunks so no full
    (J*B_pad, hw_tile) temporaries are ever live."""
    T, Bp, J = n_timesteps, batch_pad, joints
    f32 = jnp.float32

    idx = 0
    if need_softmax:
        s_ref, e_ref = rest[idx], rest[idx + 1]     # suffix-softmax state / exp staging
        idx += 2
    if stage_targets:
        tt_vmem, tgt_vmem = rest[idx], rest[idx + 1]
        idx += 2
        # Cast the (narrow-dtype) targets to f32 once per grid step, streamed per joint.
        for j in range(J):
            sl = slice(j * Bp, (j + 1) * Bp)
            tt_vmem[sl, :] = tt_ref[sl, :].astype(f32)
            tgt_vmem[sl, :] = tgt_ref[sl, :].astype(f32)

        def tt_row(j):
            return tt_vmem[j * Bp:(j + 1) * Bp, :]

        def tgt_row(j):
            return tgt_vmem[j * Bp:(j + 1) * Bp, :]
    else:
        def tt_row(j):
            return tt_ref[j * Bp:(j + 1) * Bp, :].astype(f32)

        def tgt_row(j):
            return tgt_ref[j * Bp:(j + 1) * Bp, :].astype(f32)

    def pred_row(t, j):
        return pred_ref[t, j * Bp:(j + 1) * Bp, :].astype(f32)

    # Per-row student coefficient (1 - alpha) * w^2 (zero on padded batch rows).
    # Tiny (J*Bp, 1) column: hoisting it costs only a handful of vregs.
    cw = cw_ref[...].astype(f32)

    # --------------------------- reverse time loop ---------------------------
    for g in range(T):                              # unrolled; t = T - 1 - g
        t = T - 1 - g
        lam_pow = float(lam) ** g                   # lambda^(T-t-1), compile-time const
        first = (g == 0)
        do_sm = need_softmax and (g != T - 1)       # S_{-1} is never read

        # Pass 1: running per-(b,hw) max over joints (pure VPU on aligned rows).
        if do_sm:
            m = pred_row(t, 0)
            for j in range(1, J):
                m = jnp.maximum(m, pred_row(t, j))

        # Pass 2: fused teacher + student accumulation, streamed per joint.
        den = None
        for j in range(J):
            sl = slice(j * Bp, (j + 1) * Bp)
            p = pred_row(t, j)                      # (Bp, hw_tile)
            dt = p - tt_row(j)                      # teacher branch (lambda=1, no weight)
            if first or lam == 1.0:
                tj = tgt_row(j)                     # S term vanishes; lambda power is 1
            else:
                tj = (1.0 - lam) * s_ref[sl, :]
                if lam_pow != 0.0:
                    tj = tj + lam_pow * tgt_row(j)
            sd = p - tj                             # student branch
            contrib = alpha * (dt * dt) + cw[j * Bp:(j + 1) * Bp, :] * (sd * sd)
            if first:
                acc_ref[sl, :] = contrib            # first step: plain store, no zero-init
            else:
                acc_ref[sl, :] = acc_ref[sl, :] + contrib
            if do_sm:
                e = jnp.exp(p - m)
                e_ref[sl, :] = e
                den = e if den is None else den + e

        # Pass 3: suffix-softmax state update S_{t-1} = softmax(pred_t) + lam * S_t.
        if do_sm:
            inv = pl.reciprocal(den, approx=False)  # exact; one (Bp,hw_tile) recip/step
            for j in range(J):
                sl = slice(j * Bp, (j + 1) * Bp)
                sm = e_ref[sl, :] * inv
                if first or lam == 0.0:             # S_t is (implicitly) zero / scaled by 0
                    s_ref[sl, :] = sm
                else:
                    s_ref[sl, :] = sm + lam * s_ref[sl, :]

    # ------------- single cross-lane/sublane reduction per HW tile -----------
    if mask_cols:
        col = pl.program_id(0) * hw_tile + jax.lax.broadcasted_iota(
            jnp.int32, (Bp, hw_tile), 1)
        col_ok = col < hw_valid
    partial = None
    for j in range(J):
        a = acc_ref[j * Bp:(j + 1) * Bp, :]
        if mask_cols:
            a = jnp.where(col_ok, a, 0.0)
        ps = jnp.sum(a)
        partial = ps if partial is None else partial + ps
    out_ref[...] = jnp.full(out_ref.shape, partial, dtype=out_ref.dtype)


# ------------------------------ wrapper helpers ------------------------------
def _hw_knobs():
    """(vmem_budget_bytes, hw_tile_target, min_parallel_tiles) per TPU generation."""
    try:
        cap = int(pltpu.get_tpu_info().vmem_capacity_bytes)
    except Exception:
        cap = None
    if cap is None:                       # unknown: be conservative (v7x-safe)
        return 48 * 2 ** 20, 512, 4
    if cap <= 64 * 2 ** 20:               # v7x-class: 64 MiB VMEM, 2 TensorCores
        return int(0.75 * cap), 256, 4
    return int(min(0.75 * cap, 96 * 2 ** 20)), 1024, 2   # v5e / v6e class


def _pick_hw_tile(hw_pad, target, min_tiles):
    """Largest 128-multiple divisor of hw_pad that is <= target, preferring ones
    that leave at least `min_tiles` parallel grid steps."""
    divs = [d for d in range(128, hw_pad + 1, 128) if hw_pad % d == 0]
    ok = [d for d in divs if d <= target and hw_pad // d >= min_tiles]
    if ok:
        return max(ok)
    ok = [d for d in divs if d <= target]
    return max(ok) if ok else divs[0]


def _vmem_estimate(T, JB, Bp, hwt, in_b, tgt_b, need_softmax, stage_targets):
    est = 2 * T * JB * hwt * in_b            # pred block, double-buffered
    est += 2 * 2 * JB * hwt * tgt_b          # tt + tgt blocks, double-buffered
    est += JB * hwt * 4                      # fused SSE accumulator scratch
    if need_softmax:
        est += 2 * JB * hwt * 4              # softmax state + exp staging
    if stage_targets:
        est += 2 * JB * hwt * 4              # staged f32 targets
    est += 10 * Bp * hwt * 4                 # streamed per-joint temporaries headroom
    est += 2 << 20                           # cw/out blocks, sems, internal scratch
    return est


# --------------------------------- wrapper -----------------------------------
def joints_mse_loss_distillation(outputs, teacher_target, target, target_weight=None,
                                 *, use_target_weight=True, lambda_val=1.0,
                                 alpha=0.5, hw_tile_target=None):
    """outputs: list/tuple of T arrays (B,J,H,W) or a stacked (T,B,J,H,W) array.
    teacher_target / target: (B,J,H,W); target_weight: (B,J,1) (only needed when
    use_target_weight=True).  Math is done in f32 inside the kernel."""
    preds = jnp.stack(outputs, axis=0) if isinstance(outputs, (list, tuple)) else outputs
    T, B, J, H, W = preds.shape
    HW = H * W
    B_pad = ((B + 7) // 8) * 8
    HW_pad = ((HW + 127) // 128) * 128
    JB = J * B_pad

    preds = preds.reshape(T, B, J, HW)
    tt = teacher_target.reshape(B, J, HW)
    tgt = target.reshape(B, J, HW)
    if B_pad != B or HW_pad != HW:
        preds = jnp.pad(preds, ((0, 0), (0, B_pad - B), (0, 0), (0, HW_pad - HW)))
        tt = jnp.pad(tt, ((0, B_pad - B), (0, 0), (0, HW_pad - HW)))
        tgt = jnp.pad(tgt, ((0, B_pad - B), (0, 0), (0, HW_pad - HW)))

    # Joint-major merged layout (row = j*B_pad + b): per-joint row groups are
    # (8,128)-tile aligned, so the softmax-over-joints reduce is pure VPU work.
    preds = preds.transpose(0, 2, 1, 3).reshape(T, JB, HW_pad)
    tt = tt.transpose(1, 0, 2).reshape(JB, HW_pad)
    tgt = tgt.transpose(1, 0, 2).reshape(JB, HW_pad)

    # Per-row student coefficient (1-alpha)*w^2; zero on padded batch rows.
    if use_target_weight:
        w = target_weight.reshape(B, J).astype(jnp.float32)
        cw_bj = (1.0 - alpha) * w * w
    else:
        cw_bj = jnp.full((B, J), 1.0 - alpha, dtype=jnp.float32)
    cw = jnp.pad(cw_bj, ((0, B_pad - B), (0, 0))).transpose(1, 0).reshape(JB, 1)

    need_softmax = (T > 1) and (float(lambda_val) != 1.0)
    stage_targets = (tt.dtype != jnp.float32) or (tgt.dtype != jnp.float32)

    vmem_budget, tile_target, min_tiles = _hw_knobs()
    if hw_tile_target is not None:
        tile_target = int(hw_tile_target)
    hwt = _pick_hw_tile(HW_pad, tile_target, min_tiles)
    in_b = jnp.dtype(preds.dtype).itemsize
    tgt_b = max(jnp.dtype(tt.dtype).itemsize, jnp.dtype(tgt.dtype).itemsize)
    while (_vmem_estimate(T, JB, B_pad, hwt, in_b, tgt_b, need_softmax,
                          stage_targets) > vmem_budget and hwt > 128):
        smaller = [d for d in range(128, hwt, 128) if HW_pad % d == 0]
        if not smaller:
            break
        hwt = max(smaller)
    n_tiles = HW_pad // hwt

    scratch = [pltpu.VMEM((JB, hwt), jnp.float32)]              # fused SSE accumulator
    if need_softmax:
        scratch += [pltpu.VMEM((JB, hwt), jnp.float32),          # suffix-softmax state S
                    pltpu.VMEM((JB, hwt), jnp.float32)]          # exp() staging
    if stage_targets:
        scratch += [pltpu.VMEM((JB, hwt), jnp.float32),          # staged f32 teacher target
                    pltpu.VMEM((JB, hwt), jnp.float32)]          # staged f32 student target

    kernel = functools.partial(
        _distill_kernel,
        n_timesteps=T, batch_pad=B_pad, joints=J,
        lam=float(lambda_val), alpha=float(alpha),
        hw_valid=HW, hw_tile=hwt, mask_cols=(HW_pad != HW),
        need_softmax=need_softmax, stage_targets=stage_targets)

    out = pl.pallas_call(
        kernel,
        grid=(n_tiles,),
        in_specs=[
            pl.BlockSpec((T, JB, hwt), lambda i: (0, 0, i)),     # all timesteps, one HW tile
            pl.BlockSpec((JB, hwt), lambda i: (0, i)),           # teacher target tile
            pl.BlockSpec((JB, hwt), lambda i: (0, i)),           # student target tile
            pl.BlockSpec((JB, 1), lambda i: (0, 0)),             # per-row coefficient
        ],
        out_specs=pl.BlockSpec((1, 1, 128), lambda i: (i, 0, 0)),  # lane-dense partials
        out_shape=jax.ShapeDtypeStruct((n_tiles, 1, 128), jnp.float32),
        scratch_shapes=scratch,
        compiler_params=pltpu.CompilerParams(
            dimension_semantics=("parallel",),   # HW tiles independent -> 2-TC split on v7x
            vmem_limit_bytes=int(vmem_budget),
        ),
    )(preds, tt, tgt, cw)

    scale = 0.5 / (J * B * HW)   # 0.5 * mean over (B,HW), averaged over J, summed over t
    return scale * jnp.sum(out[:, 0, 0])


# ------------------------- pure-JAX reference -------------------------------
def _ref_joints_mse(pred, tgt, tw, use_tw):
    B, J, HW = pred.shape
    loss = 0.0
    for j in range(J):
        p = pred[:, j, :]
        g = tgt[:, j, :]
        if use_tw:
            w = tw[:, j]            # (B, 1)
            p = p * w
            g = g * w
        loss += 0.5 * jnp.mean((p - g) ** 2)
    return loss / J


def _ref_tdlambda(preds, target, tw, use_tw, lam):
    T = len(preds)
    loss = 0.0
    for t in range(T):
        sum_term = jnp.zeros_like(preds[t])
        for i, n in enumerate(range(t + 1, T), 1):
            sm = jax.nn.softmax(preds[n], axis=1)
            sum_term = sum_term + (lam ** (i - 1)) * sm
        tj = (1.0 - lam) * sum_term + (lam ** (T - t - 1)) * target
        loss += _ref_joints_mse(preds[t], tj, tw, use_tw)
    return loss


def _reference(outputs, teacher_target, target, target_weight,
               use_target_weight, lambda_val, alpha):
    B, J, H, W = outputs[0].shape
    preds = [o.reshape(B, J, H * W).astype(jnp.float32) for o in outputs]
    tt = teacher_target.reshape(B, J, H * W).astype(jnp.float32)
    tgt = target.reshape(B, J, H * W).astype(jnp.float32)
    tw = (target_weight.reshape(B, J, 1).astype(jnp.float32)
          if target_weight is not None else None)
    teacher_loss = _ref_tdlambda(preds, tt, None, False, 1.0)
    mse_loss = _ref_tdlambda(preds, tgt, tw, use_target_weight, lambda_val)
    return alpha * teacher_loss + (1.0 - alpha) * mse_loss


if __name__ == "__main__":
    # Case 1: aligned shapes (B % 8 == 0, HW % 128 == 0), weighted student loss.
    T, B, J, H, W = 3, 8, 4, 32, 32
    keys = jax.random.split(jax.random.PRNGKey(0), T + 3)
    outputs = [jax.random.normal(keys[t], (B, J, H, W), dtype=jnp.float32) for t in range(T)]
    teacher_target = jax.random.normal(keys[T], (B, J, H, W), dtype=jnp.float32)
    target = jax.random.normal(keys[T + 1], (B, J, H, W), dtype=jnp.float32)
    target_weight = jax.random.uniform(keys[T + 2], (B, J, 1), dtype=jnp.float32)

    fn = jax.jit(functools.partial(joints_mse_loss_distillation,
                                   use_target_weight=True, lambda_val=0.7, alpha=0.5))
    loss = jax.block_until_ready(fn(outputs, teacher_target, target, target_weight))
    ref = _reference(outputs, teacher_target, target, target_weight, True, 0.7, 0.5)
    assert jnp.allclose(loss, ref, rtol=2e-3, atol=1e-5), (float(loss), float(ref))

    # Case 2: ragged shapes (B=5 -> pad 8, HW=117 -> pad 128), unweighted student.
    T2, B2, J2, H2, W2 = 2, 5, 3, 9, 13
    keys2 = jax.random.split(jax.random.PRNGKey(1), T2 + 2)
    outputs2 = [jax.random.normal(keys2[t], (B2, J2, H2, W2), dtype=jnp.float32)
                for t in range(T2)]
    teacher_target2 = jax.random.normal(keys2[T2], (B2, J2, H2, W2), dtype=jnp.float32)
    target2 = jax.random.normal(keys2[T2 + 1], (B2, J2, H2, W2), dtype=jnp.float32)

    fn2 = jax.jit(functools.partial(joints_mse_loss_distillation,
                                    use_target_weight=False, lambda_val=0.5, alpha=0.3))
    loss2 = jax.block_until_ready(fn2(outputs2, teacher_target2, target2, None))
    ref2 = _reference(outputs2, teacher_target2, target2, None, False, 0.5, 0.3)
    assert jnp.allclose(loss2, ref2, rtol=2e-3, atol=1e-5), (float(loss2), float(ref2))

    print("KERNEL_OK")
</pallas_src>

<mosaic_0001>
module attributes {stable_mosaic.version = 11 : i64} {
  func.func @_distill_kernel(%arg0: i32, %arg1: memref<3x32x256xf32, #tpu.memory_space<vmem>>, %arg2: memref<32x256xf32, #tpu.memory_space<vmem>>, %arg3: memref<32x256xf32, #tpu.memory_space<vmem>>, %arg4: memref<32x1xf32, #tpu.memory_space<vmem>>, %arg5: memref<1x1x128xf32, #tpu.memory_space<vmem>>, %arg6: memref<32x256xf32, #tpu.memory_space<vmem>>, %arg7: memref<32x256xf32, #tpu.memory_space<vmem>>, %arg8: memref<32x256xf32, #tpu.memory_space<vmem>>) attributes {dimension_semantics = [#tpu.dimension_semantics<parallel>], iteration_bounds = array<i64: 4>, scalar_prefetch = 0 : i64, scratch_operands = 3 : i64, tpu.core_type = #tpu.core_type<tc>, window_params = [{transform_indices = @transform_0, window_bounds = array<i64: 3, 32, 256>}, {transform_indices = @transform_1, window_bounds = array<i64: 32, 256>}, {transform_indices = @transform_2, window_bounds = array<i64: 32, 256>}, {pipeline_mode = #tpu.pipeline_mode<synchronous>, transform_indices = @transform_3, window_bounds = array<i64: 32, 1>}, {transform_indices = @transform_4, window_bounds = array<i64: 1, 1, 128>}]} {
    %c0 = arith.constant 0 : index
    %c0_0 = arith.constant 0 : index
    %0 = vector.load %arg4[%c0, %c0_0] : memref<32x1xf32, #tpu.memory_space<vmem>>, vector<32x1xf32>
    %c2 = arith.constant 2 : index
    %c0_1 = arith.constant 0 : index
    %c0_2 = arith.constant 0 : index
    %1 = vector.load %arg1[%c2, %c0_1, %c0_2] : memref<3x32x256xf32, #tpu.memory_space<vmem>>, vector<1x8x256xf32>
    %2 = vector.shape_cast %1 : vector<1x8x256xf32> to vector<8x256xf32>
    %c2_3 = arith.constant 2 : index
    %c8 = arith.constant 8 : index
    %c0_4 = arith.constant 0 : index
    %3 = vector.load %arg1[%c2_3, %c8, %c0_4] : memref<3x32x256xf32, #tpu.memory_space<vmem>>, vector<1x8x256xf32>
    %4 = vector.shape_cast %3 : vector<1x8x256xf32> to vector<8x256xf32>
    %5 = arith.maximumf %2, %4 : vector<8x256xf32>
    %c2_5 = arith.constant 2 : index
    %c16 = arith.constant 16 : index
    %c0_6 = arith.constant 0 : index
    %6 = vector.load %arg1[%c2_5, %c16, %c0_6] : memref<3x32x256xf32, #tpu.memory_space<vmem>>, vector<1x8x256xf32>
    %7 = vector.shape_cast %6 : vector<1x8x256xf32> to vector<8x256xf32>
    %8 = arith.maximumf %5, %7 : vector<8x256xf32>
    %c2_7 = arith.constant 2 : index
    %c24 = arith.constant 24 : index
    %c0_8 = arith.constant 0 : index
    %9 = vector.load %arg1[%c2_7, %c24, %c0_8] : memref<3x32x256xf32, #tpu.memory_space<vmem>>, vector<1x8x256xf32>
    %10 = vector.shape_cast %9 : vector<1x8x256xf32> to vector<8x256xf32>
    %11 = arith.maximumf %8, %10 : vector<8x256xf32>
    %c2_9 = arith.constant 2 : index
    %c0_10 = arith.constant 0 : index
    %c0_11 = arith.constant 0 : index
    %12 = vector.load %arg1[%c2_9, %c0_10, %c0_11] : memref<3x32x256xf32, #tpu.memory_space<vmem>>, vector<1x8x256xf32>
    %13 = vector.shape_cast %12 : vector<1x8x256xf32> to vector<8x256xf32>
    %c0_12 = arith.constant 0 : index
    %c0_13 = arith.constant 0 : index
    %14 = vector.load %arg2[%c0_12, %c0_13] : memref<32x256xf32, #tpu.memory_space<vmem>>, vector<8x256xf32>
    %15 = arith.subf %13, %14 : vector<8x256xf32>
    %c0_14 = arith.constant 0 : index
    %c0_15 = arith.constant 0 : index
    %16 = vector.load %arg3[%c0_14, %c0_15] : memref<32x256xf32, #tpu.memory_space<vmem>>, vector<8x256xf32>
    %17 = arith.subf %13, %16 : vector<8x256xf32>
    %18 = arith.mulf %15, %15 : vector<8x256xf32>
    %cst = arith.constant 5.000000e-01 : f32
    %19 = vector.broadcast %cst : f32 to vector<8x256xf32>
    %20 = arith.mulf %19, %18 : vector<8x256xf32>
    %21 = vector.extract_strided_slice %0 {offsets = [0, 0], sizes = [8, 1], strides = [1, 1]} : vector<32x1xf32> to vector<8x1xf32>
    %22 = arith.mulf %17, %17 : vector<8x256xf32>
    %23 = vector.broadcast %21 : vector<8x1xf32> to vector<8x256xf32>
    %24 = arith.mulf %23, %22 : vector<8x256xf32>
    %25 = arith.addf %20, %24 : vector<8x256xf32>
    %c0_16 = arith.constant 0 : index
    %c0_17 = arith.constant 0 : index
    %26 = vector.load %arg6[%c0_16, %c0_17] : memref<32x256xf32, #tpu.memory_space<vmem>>, vector<8x256xf32>
    tpu.vector_store %arg6[%c0_16, %c0_17], %25 {strides = array<i32>} : memref<32x256xf32, #tpu.memory_space<vmem>>, vector<8x256xf32>,
    %27 = arith.subf %13, %11 : vector<8x256xf32>
    %28 = math.exp %27 : vector<8x256xf32>
    %c0_18 = arith.constant 0 : index
    %c0_19 = arith.constant 0 : index
    %29 = vector.load %arg8[%c0_18, %c0_19] : memref<32x256xf32, #tpu.memory_space<vmem>>, vector<8x256xf32>
    tpu.vector_store %arg8[%c0_18, %c0_19], %28 {strides = array<i32>} : memref<32x256xf32, #tpu.memory_space<vmem>>, vector<8x256xf32>,
    %c2_20 = arith.constant 2 : index
    %c8_21 = arith.constant 8 : index
    %c0_22 = arith.constant 0 : index
    %30 = vector.load %arg1[%c2_20, %c8_21, %c0_22] : memref<3x32x256xf32, #tpu.memory_space<vmem>>, vector<1x8x256xf32>
    %31 = vector.shape_cast %30 : vector<1x8x256xf32> to vector<8x256xf32>
    %c8_23 = arith.constant 8 : index
    %c0_24 = arith.constant 0 : index
    %32 = vector.load %arg2[%c8_23, %c0_24] : memref<32x256xf32, #tpu.memory_space<vmem>>, vector<8x256xf32>
    %33 = arith.subf %31, %32 : vector<8x256xf32>
    %c8_25 = arith.constant 8 : index
    %c0_26 = arith.constant 0 : index
    %34 = vector.load %arg3[%c8_25, %c0_26] : memref<32x256xf32, #tpu.memory_space<vmem>>, vector<8x256xf32>
    %35 = arith.subf %31, %34 : vector<8x256xf32>
    %36 = arith.mulf %33, %33 : vector<8x256xf32>
    %cst_27 = arith.constant 5.000000e-01 : f32
    %37 = vector.broadcast %cst_27 : f32 to vector<8x256xf32>
    %38 = arith.mulf %37, %36 : vector<8x256xf32>
    %39 = vector.extract_strided_slice %0 {offsets = [8, 0], sizes = [8, 1], strides = [1, 1]} : vector<32x1xf32> to vector<8x1xf32>
    %40 = arith.mulf %35, %35 : vector<8x256xf32>
    %41 = vector.broadcast %39 : vector<8x1xf32> to vector<8x256xf32>
    %42 = arith.mulf %41, %40 : vector<8x256xf32>
    %43 = arith.addf %38, %42 : vector<8x256xf32>
    %c8_28 = arith.constant 8 : index
    %c0_29 = arith.constant 0 : index
    %44 = vector.load %arg6[%c8_28, %c0_29] : memref<32x256xf32, #tpu.memory_space<vmem>>, vector<8x256xf32>
    tpu.vector_store %arg6[%c8_28, %c0_29], %43 {strides = array<i32>} : memref<32x256xf32, #tpu.memory_space<vmem>>, vector<8x256xf32>,
    %45 = arith.subf %31, %11 : vector<8x256xf32>
    %46 = math.exp %45 : vector<8x256xf32>
    %c8_30 = arith.constant 8 : index
    %c0_31 = arith.constant 0 : index
    %47 = vector.load %arg8[%c8_30, %c0_31] : memref<32x256xf32, #tpu.memory_space<vmem>>, vector<8x256xf32>
    tpu.vector_store %arg8[%c8_30, %c0_31], %46 {strides = array<i32>} : memref<32x256xf32, #tpu.memory_space<vmem>>, vector<8x256xf32>,
    %48 = arith.addf %28, %46 : vector<8x256xf32>
    %c2_32 = arith.constant 2 : index
    %c16_33 = arith.constant 16 : index
    %c0_34 = arith.constant 0 : index
    %49 = vector.load %arg1[%c2_32, %c16_33, %c0_34] : memref<3x32x256xf32, #tpu.memory_space<vmem>>, vector<1x8x256xf32>
    %50 = vector.shape_cast %49 : vector<1x8x256xf32> to vector<8x256xf32>
    %c16_35 = arith.constant 16 : index
    %c0_36 = arith.constant 0 : index
    %51 = vector.load %arg2[%c16_35, %c0_36] : memref<32x256xf32, #tpu.memory_space<vmem>>, vector<8x256xf32>
    %52 = arith.subf %50, %51 : vector<8x256xf32>
    %c16_37 = arith.constant 16 : index
    %c0_38 = arith.constant 0 : index
    %53 = vector.load %arg3[%c16_37, %c0_38] : memref<32x256xf32, #tpu.memory_space<vmem>>, vector<8x256xf32>
    %54 = arith.subf %50, %53 : vector<8x256xf32>
    %55 = arith.mulf %52, %52 : vector<8x256xf32>
    %cst_39 = arith.constant 5.000000e-01 : f32
    %56 = vector.broadcast %cst_39 : f32 to vector<8x256xf32>
    %57 = arith.mulf %56, %55 : vector<8x256xf32>
    %58 = vector.extract_strided_slice %0 {offsets = [16, 0], sizes = [8, 1], strides = [1, 1]} : vector<32x1xf32> to vector<8x1xf32>
    %59 = arith.mulf %54, %54 : vector<8x256xf32>
    %60 = vector.broadcast %58 : vector<8x1xf32> to vector<8x256xf32>
    %61 = arith.mulf %60, %59 : vector<8x256xf32>
    %62 = arith.addf %57, %61 : vector<8x256xf32>
    %c16_40 = arith.constant 16 : index
    %c0_41 = arith.constant 0 : index
    %63 = vector.load %arg6[%c16_40, %c0_41] : memref<32x256xf32, #tpu.memory_space<vmem>>, vector<8x256xf32>
    tpu.vector_store %arg6[%c16_40, %c0_41], %62 {strides = array<i32>} : memref<32x256xf32, #tpu.memory_space<vmem>>, vector<8x256xf32>,
    %64 = arith.subf %50, %11 : vector<8x256xf32>
    %65 = math.exp %64 : vector<8x256xf32>
    %c16_42 = arith.constant 16 : index
    %c0_43 = arith.constant 0 : index
    %66 = vector.load %arg8[%c16_42, %c0_43] : memref<32x256xf32, #tpu.memory_space<vmem>>, vector<8x256xf32>
    tpu.vector_store %arg8[%c16_42, %c0_43], %65 {strides = array<i32>} : memref<32x256xf32, #tpu.memory_space<vmem>>, vector<8x256xf32>,
    %67 = arith.addf %48, %65 : vector<8x256xf32>
    %c2_44 = arith.constant 2 : index
    %c24_45 = arith.constant 24 : index
    %c0_46 = arith.constant 0 : index
    %68 = vector.load %arg1[%c2_44, %c24_45, %c0_46] : memref<3x32x256xf32, #tpu.memory_space<vmem>>, vector<1x8x256xf32>
    %69 = vector.shape_cast %68 : vector<1x8x256xf32> to vector<8x256xf32>
    %c24_47 = arith.constant 24 : index
    %c0_48 = arith.constant 0 : index
    %70 = vector.load %arg2[%c24_47, %c0_48] : memref<32x256xf32, #tpu.memory_space<vmem>>, vector<8x256xf32>
    %71 = arith.subf %69, %70 : vector<8x256xf32>
    %c24_49 = arith.constant 24 : index
    %c0_50 = arith.constant 0 : index
    %72 = vector.load %arg3[%c24_49, %c0_50] : memref<32x256xf32, #tpu.memory_space<vmem>>, vector<8x256xf32>
    %73 = arith.subf %69, %72 : vector<8x256xf32>
    %74 = arith.mulf %71, %71 : vector<8x256xf32>
    %cst_51 = arith.constant 5.000000e-01 : f32
    %75 = vector.broadcast %cst_51 : f32 to vector<8x256xf32>
    %76 = arith.mulf %75, %74 : vector<8x256xf32>
    %77 = vector.extract_strided_slice %0 {offsets = [24, 0], sizes = [8, 1], strides = [1, 1]} : vector<32x1xf32> to vector<8x1xf32>
    %78 = arith.mulf %73, %73 : vector<8x256xf32>
    %79 = vector.broadcast %77 : vector<8x1xf32> to vector<8x256xf32>
    %80 = arith.mulf %79, %78 : vector<8x256xf32>
    %81 = arith.addf %76, %80 : vector<8x256xf32>
    %c24_52 = arith.constant 24 : index
    %c0_53 = arith.constant 0 : index
    %82 = vector.load %arg6[%c24_52, %c0_53] : memref<32x256xf32, #tpu.memory_space<vmem>>, vector<8x256xf32>
    tpu.vector_store %arg6[%c24_52, %c0_53], %81 {strides = array<i32>} : memref<32x256xf32, #tpu.memory_space<vmem>>, vector<8x256xf32>,
    %83 = arith.subf %69, %11 : vector<8x256xf32>
    %84 = math.exp %83 : vector<8x256xf32>
    %c24_54 = arith.constant 24 : index
    %c0_55 = arith.constant 0 : index
    %85 = vector.load %arg8[%c24_54, %c0_55] : memref<32x256xf32, #tpu.memory_space<vmem>>, vector<8x256xf32>
    tpu.vector_store %arg8[%c24_54, %c0_55], %84 {strides = array<i32>} : memref<32x256xf32, #tpu.memory_space<vmem>>, vector<8x256xf32>,
    %86 = arith.addf %67, %84 : vector<8x256xf32>
    %87 = tpu.reciprocal %86 : vector<8x256xf32> -> vector<8x256xf32>
    %c0_56 = arith.constant 0 : index
    %c0_57 = arith.constant 0 : index
    %88 = vector.load %arg8[%c0_56, %c0_57] : memref<32x256xf32, #tpu.memory_space<vmem>>, vector<8x256xf32>
    %89 = arith.mulf %88, %87 : vector<8x256xf32>
    %c0_58 = arith.constant 0 : index
    %c0_59 = arith.constant 0 : index
    %90 = vector.load %arg7[%c0_58, %c0_59] : memref<32x256xf32, #tpu.memory_space<vmem>>, vector<8x256xf32>
    tpu.vector_store %arg7[%c0_58, %c0_59], %89 {strides = array<i32>} : memref<32x256xf32, #tpu.memory_space<vmem>>, vector<8x256xf32>,
    %c8_60 = arith.constant 8 : index
    %c0_61 = arith.constant 0 : index
    %91 = vector.load %arg8[%c8_60, %c0_61] : memref<32x256xf32, #tpu.memory_space<vmem>>, vector<8x256xf32>
    %92 = arith.mulf %91, %87 : vector<8x256xf32>
    %c8_62 = arith.constant 8 : index
    %c0_63 = arith.constant 0 : index
    %93 = vector.load %arg7[%c8_62, %c0_63] : memref<32x256xf32, #tpu.memory_space<vmem>>, vector<8x256xf32>
    tpu.vector_store %arg7[%c8_62, %c0_63], %92 {strides = array<i32>} : memref<32x256xf32, #tpu.memory_space<vmem>>, vector<8x256xf32>,
    %c16_64 = arith.constant 16 : index
    %c0_65 = arith.constant 0 : index
    %94 = vector.load %arg8[%c16_64, %c0_65] : memref<32x256xf32, #tpu.memory_space<vmem>>, vector<8x256xf32>
    %95 = arith.mulf %94, %87 : vector<8x256xf32>
    %c16_66 = arith.constant 16 : index
    %c0_67 = arith.constant 0 : index
    %96 = vector.load %arg7[%c16_66, %c0_67] : memref<32x256xf32, #tpu.memory_space<vmem>>, vector<8x256xf32>
    tpu.vector_store %arg7[%c16_66, %c0_67], %95 {strides = array<i32>} : memref<32x256xf32, #tpu.memory_space<vmem>>, vector<8x256xf32>,
    %c24_68 = arith.constant 24 : index
    %c0_69 = arith.constant 0 : index
    %97 = vector.load %arg8[%c24_68, %c0_69] : memref<32x256xf32, #tpu.memory_space<vmem>>, vector<8x256xf32>
    %98 = arith.mulf %97, %87 : vector<8x256xf32>
    %c24_70 = arith.constant 24 : index
    %c0_71 = arith.constant 0 : index
    %99 = vector.load %arg7[%c24_70, %c0_71] : memref<32x256xf32, #tpu.memory_space<vmem>>, vector<8x256xf32>
    tpu.vector_store %arg7[%c24_70, %c0_71], %98 {strides = array<i32>} : memref<32x256xf32, #tpu.memory_space<vmem>>, vector<8x256xf32>,
    %c1 = arith.constant 1 : index
    %c0_72 = arith.constant 0 : index
    %c0_73 = arith.constant 0 : index
    %100 = vector.load %arg1[%c1, %c0_72, %c0_73] : memref<3x32x256xf32, #tpu.memory_space<vmem>>, vector<1x8x256xf32>
    %101 = vector.shape_cast %100 : vector<1x8x256xf32> to vector<8x256xf32>
    %c1_74 = arith.constant 1 : index
    %c8_75 = arith.constant 8 : index
    %c0_76 = arith.constant 0 : index
    %102 = vector.load %arg1[%c1_74, %c8_75, %c0_76] : memref<3x32x256xf32, #tpu.memory_space<vmem>>, vector<1x8x256xf32>
    %103 = vector.shape_cast %102 : vector<1x8x256xf32> to vector<8x256xf32>
    %104 = arith.maximumf %101, %103 : vector<8x256xf32>
    %c1_77 = arith.constant 1 : index
    %c16_78 = arith.constant 16 : index
    %c0_79 = arith.constant 0 : index
    %105 = vector.load %arg1[%c1_77, %c16_78, %c0_79] : memref<3x32x256xf32, #tpu.memory_space<vmem>>, vector<1x8x256xf32>
    %106 = vector.shape_cast %105 : vector<1x8x256xf32> to vector<8x256xf32>
    %107 = arith.maximumf %104, %106 : vector<8x256xf32>
    %c1_80 = arith.constant 1 : index
    %c24_81 = arith.constant 24 : index
    %c0_82 = arith.constant 0 : index
    %108 = vector.load %arg1[%c1_80, %c24_81, %c0_82] : memref<3x32x256xf32, #tpu.memory_space<vmem>>, vector<1x8x256xf32>
    %109 = vector.shape_cast %108 : vector<1x8x256xf32> to vector<8x256xf32>
    %110 = arith.maximumf %107, %109 : vector<8x256xf32>
    %c1_83 = arith.constant 1 : index
    %c0_84 = arith.constant 0 : index
    %c0_85 = arith.constant 0 : index
    %111 = vector.load %arg1[%c1_83, %c0_84, %c0_85] : memref<3x32x256xf32, #tpu.memory_space<vmem>>, vector<1x8x256xf32>
    %112 = vector.shape_cast %111 : vector<1x8x256xf32> to vector<8x256xf32>
    %c0_86 = arith.constant 0 : index
    %c0_87 = arith.constant 0 : index
    %113 = vector.load %arg2[%c0_86, %c0_87] : memref<32x256xf32, #tpu.memory_space<vmem>>, vector<8x256xf32>
    %114 = arith.subf %112, %113 : vector<8x256xf32>
    %c0_88 = arith.constant 0 : index
    %c0_89 = arith.constant 0 : index
    %115 = vector.load %arg7[%c0_88, %c0_89] : memref<32x256xf32, #tpu.memory_space<vmem>>, vector<8x256xf32>
    %cst_90 = arith.constant 3.000000e-01 : f32
    %116 = vector.broadcast %cst_90 : f32 to vector<8x256xf32>
    %117 = arith.mulf %116, %115 : vector<8x256xf32>
    %c0_91 = arith.constant 0 : index
    %c0_92 = arith.constant 0 : index
    %118 = vector.load %arg3[%c0_91, %c0_92] : memref<32x256xf32, #tpu.memory_space<vmem>>, vector<8x256xf32>
    %cst_93 = arith.constant 0.699999988 : f32
    %119 = vector.broadcast %cst_93 : f32 to vector<8x256xf32>
    %120 = arith.mulf %119, %118 : vector<8x256xf32>
    %121 = arith.addf %117, %120 : vector<8x256xf32>
    %122 = arith.subf %112, %121 : vector<8x256xf32>
    %123 = arith.mulf %114, %114 : vector<8x256xf32>
    %cst_94 = arith.constant 5.000000e-01 : f32
    %124 = vector.broadcast %cst_94 : f32 to vector<8x256xf32>
    %125 = arith.mulf %124, %123 : vector<8x256xf32>
    %126 = vector.extract_strided_slice %0 {offsets = [0, 0], sizes = [8, 1], strides = [1, 1]} : vector<32x1xf32> to vector<8x1xf32>
    %127 = arith.mulf %122, %122 : vector<8x256xf32>
    %128 = vector.broadcast %126 : vector<8x1xf32> to vector<8x256xf32>
    %129 = arith.mulf %128, %127 : vector<8x256xf32>
    %130 = arith.addf %125, %129 : vector<8x256xf32>
    %c0_95 = arith.constant 0 : index
    %c0_96 = arith.constant 0 : index
    %131 = vector.load %arg6[%c0_95, %c0_96] : memref<32x256xf32, #tpu.memory_space<vmem>>, vector<8x256xf32>
    %132 = arith.addf %131, %130 : vector<8x256xf32>
    %c0_97 = arith.constant 0 : index
    %c0_98 = arith.constant 0 : index
    %133 = vector.load %arg6[%c0_97, %c0_98] : memref<32x256xf32, #tpu.memory_space<vmem>>, vector<8x256xf32>
    tpu.vector_store %arg6[%c0_97, %c0_98], %132 {strides = array<i32>} : memref<32x256xf32, #tpu.memory_space<vmem>>, vector<8x256xf32>,
    %134 = arith.subf %112, %110 : vector<8x256xf32>
    %135 = math.exp %134 : vector<8x256xf32>
    %c0_99 = arith.constant 0 : index
    %c0_100 = arith.constant 0 : index
    %136 = vector.load %arg8[%c0_99, %c0_100] : memref<32x256xf32, #tpu.memory_space<vmem>>, vector<8x256xf32>
    tpu.vector_store %arg8[%c0_99, %c0_100], %135 {strides = array<i32>} : memref<32x256xf32, #tpu.memory_space<vmem>>, vector<8x256xf32>,
    %c1_101 = arith.constant 1 : index
    %c8_102 = arith.constant 8 : index
    %c0_103 = arith.constant 0 : index
    %137 = vector.load %arg1[%c1_101, %c8_102, %c0_103] : memref<3x32x256xf32, #tpu.memory_space<vmem>>, vector<1x8x256xf32>
    %138 = vector.shape_cast %137 : vector<1x8x256xf32> to vector<8x256xf32>
    %c8_104 = arith.constant 8 : index
    %c0_105 = arith.constant 0 : index
    %139 = vector.load %arg2[%c8_104, %c0_105] : memref<32x256xf32, #tpu.memory_space<vmem>>, vector<8x256xf32>
    %140 = arith.subf %138, %139 : vector<8x256xf32>
    %c8_106 = arith.constant 8 : index
    %c0_107 = arith.constant 0 : index
    %141 = vector.load %arg7[%c8_106, %c0_107] : memref<32x256xf32, #tpu.memory_space<vmem>>, vector<8x256xf32>
    %cst_108 = arith.constant 3.000000e-01 : f32
    %142 = vector.broadcast %cst_108 : f32 to vector<8x256xf32>
    %143 = arith.mulf %142, %141 : vector<8x256xf32>
    %c8_109 = arith.constant 8 : index
    %c0_110 = arith.constant 0 : index
    %144 = vector.load %arg3[%c8_109, %c0_110] : memref<32x256xf32, #tpu.memory_space<vmem>>, vector<8x256xf32>
    %cst_111 = arith.constant 0.699999988 : f32
    %145 = vector.broadcast %cst_111 : f32 to vector<8x256xf32>
    %146 = arith.mulf %145, %144 : vector<8x256xf32>
    %147 = arith.addf %143, %146 : vector<8x256xf32>
    %148 = arith.subf %138, %147 : vector<8x256xf32>
    %149 = arith.mulf %140, %140 : vector<8x256xf32>
    %cst_112 = arith.constant 5.000000e-01 : f32
    %150 = vector.broadcast %cst_112 : f32 to vector<8x256xf32>
    %151 = arith.mulf %150, %149 : vector<8x256xf32>
    %152 = vector.extract_strided_slice %0 {offsets = [8, 0], sizes = [8, 1], strides = [1, 1]} : vector<32x1xf32> to vector<8x1xf32>
    %153 = arith.mulf %148, %148 : vector<8x256xf32>
    %154 = vector.broadcast %152 : vector<8x1xf32> to vector<8x256xf32>
    %155 = arith.mulf %154, %153 : vector<8x256xf32>
    %156 = arith.addf %151, %155 : vector<8x256xf32>
    %c8_113 = arith.constant 8 : index
    %c0_114 = arith.constant 0 : index
    %157 = vector.load %arg6[%c8_113, %c0_114] : memref<32x256xf32, #tpu.memory_space<vmem>>, vector<8x256xf32>
    %158 = arith.addf %157, %156 : vector<8x256xf32>
    %c8_115 = arith.constant 8 : index
    %c0_116 = arith.constant 0 : index
    %159 = vector.load %arg6[%c8_115, %c0_116] : memref<32x256xf32, #tpu.memory_space<vmem>>, vector<8x256xf32>
    tpu.vector_store %arg6[%c8_115, %c0_116], %158 {strides = array<i32>} : memref<32x256xf32, #tpu.memory_space<vmem>>, vector<8x256xf32>,
    %160 = arith.subf %138, %110 : vector<8x256xf32>
    %161 = math.exp %160 : vector<8x256xf32>
    %c8_117 = arith.constant 8 : index
    %c0_118 = arith.constant 0 : index
    %162 = vector.load %arg8[%c8_117, %c0_118] : memref<32x256xf32, #tpu.memory_space<vmem>>, vector<8x256xf32>
    tpu.vector_store %arg8[%c8_117, %c0_118], %161 {strides = array<i32>} : memref<32x256xf32, #tpu.memory_space<vmem>>, vector<8x256xf32>,
    %163 = arith.addf %135, %161 : vector<8x256xf32>
    %c1_119 = arith.constant 1 : index
    %c16_120 = arith.constant 16 : index
    %c0_121 = arith.constant 0 : index
    %164 = vector.load %arg1[%c1_119, %c16_120, %c0_121] : memref<3x32x256xf32, #tpu.memory_space<vmem>>, vector<1x8x256xf32>
    %165 = vector.shape_cast %164 : vector<1x8x256xf32> to vector<8x256xf32>
    %c16_122 = arith.constant 16 : index
    %c0_123 = arith.constant 0 : index
    %166 = vector.load %arg2[%c16_122, %c0_123] : memref<32x256xf32, #tpu.memory_space<vmem>>, vector<8x256xf32>
    %167 = arith.subf %165, %166 : vector<8x256xf32>
    %c16_124 = arith.constant 16 : index
    %c0_125 = arith.constant 0 : index
    %168 = vector.load %arg7[%c16_124, %c0_125] : memref<32x256xf32, #tpu.memory_space<vmem>>, vector<8x256xf32>
    %cst_126 = arith.constant 3.000000e-01 : f32
    %169 = vector.broadcast %cst_126 : f32 to vector<8x256xf32>
    %170 = arith.mulf %169, %168 : vector<8x256xf32>
    %c16_127 = arith.constant 16 : index
    %c0_128 = arith.constant 0 : index
    %171 = vector.load %arg3[%c16_127, %c0_128] : memref<32x256xf32, #tpu.memory_space<vmem>>, vector<8x256xf32>
    %cst_129 = arith.constant 0.699999988 : f32
    %172 = vector.broadcast %cst_129 : f32 to vector<8x256xf32>
    %173 = arith.mulf %172, %171 : vector<8x256xf32>
    %174 = arith.addf %170, %173 : vector<8x256xf32>
    %175 = arith.subf %165, %174 : vector<8x256xf32>
    %176 = arith.mulf %167, %167 : vector<8x256xf32>
    %cst_130 = arith.constant 5.000000e-01 : f32
    %177 = vector.broadcast %cst_130 : f32 to vector<8x256xf32>
    %178 = arith.mulf %177, %176 : vector<8x256xf32>
    %179 = vector.extract_strided_slice %0 {offsets = [16, 0], sizes = [8, 1], strides = [1, 1]} : vector<32x1xf32> to vector<8x1xf32>
    %180 = arith.mulf %175, %175 : vector<8x256xf32>
    %181 = vector.broadcast %179 : vector<8x1xf32> to vector<8x256xf32>
    %182 = arith.mulf %181, %180 : vector<8x256xf32>
    %183 = arith.addf %178, %182 : vector<8x256xf32>
    %c16_131 = arith.constant 16 : index
    %c0_132 = arith.constant 0 : index
    %184 = vector.load %arg6[%c16_131, %c0_132] : memref<32x256xf32, #tpu.memory_space<vmem>>, vector<8x256xf32>
    %185 = arith.addf %184, %183 : vector<8x256xf32>
    %c16_133 = arith.constant 16 : index
    %c0_134 = arith.constant 0 : index
    %186 = vector.load %arg6[%c16_133, %c0_134] : memref<32x256xf32, #tpu.memory_space<vmem>>, vector<8x256xf32>
    tpu.vector_store %arg6[%c16_133, %c0_134], %185 {strides = array<i32>} : memref<32x256xf32, #tpu.memory_space<vmem>>, vector<8x256xf32>,
    %187 = arith.subf %165, %110 : vector<8x256xf32>
    %188 = math.exp %187 : vector<8x256xf32>
    %c16_135 = arith.constant 16 : index
    %c0_136 = arith.constant 0 : index
    %189 = vector.load %arg8[%c16_135, %c0_136] : memref<32x256xf32, #tpu.memory_space<vmem>>, vector<8x256xf32>
    tpu.vector_store %arg8[%c16_135, %c0_136], %188 {strides = array<i32>} : memref<32x256xf32, #tpu.memory_space<vmem>>, vector<8x256xf32>,
    %190 = arith.addf %163, %188 : vector<8x256xf32>
    %c1_137 = arith.constant 1 : index
    %c24_138 = arith.constant 24 : index
    %c0_139 = arith.constant 0 : index
    %191 = vector.load %arg1[%c1_137, %c24_138, %c0_139] : memref<3x32x256xf32, #tpu.memory_space<vmem>>, vector<1x8x256xf32>
    %192 = vector.shape_cast %191 : vector<1x8x256xf32> to vector<8x256xf32>
    %c24_140 = arith.constant 24 : index
    %c0_141 = arith.constant 0 : index
    %193 = vector.load %arg2[%c24_140, %c0_141] : memref<32x256xf32, #tpu.memory_space<vmem>>, vector<8x256xf32>
    %194 = arith.subf %192, %193 : vector<8x256xf32>
    %c24_142 = arith.constant 24 : index
    %c0_143 = arith.constant 0 : index
    %195 = vector.load %arg7[%c24_142, %c0_143] : memref<32x256xf32, #tpu.memory_space<vmem>>, vector<8x256xf32>
    %cst_144 = arith.constant 3.000000e-01 : f32
    %196 = vector.broadcast %cst_144 : f32 to vector<8x256xf32>
    %197 = arith.mulf %196, %195 : vector<8x256xf32>
    %c24_145 = arith.constant 24 : index
    %c0_146 = arith.constant 0 : index
    %198 = vector.load %arg3[%c24_145, %c0_146] : memref<32x256xf32, #tpu.memory_space<vmem>>, vector<8x256xf32>
    %cst_147 = arith.constant 0.699999988 : f32
    %199 = vector.broadcast %cst_147 : f32 to vector<8x256xf32>
    %200 = arith.mulf %199, %198 : vector<8x256xf32>
    %201 = arith.addf %197, %200 : vector<8x256xf32>
    %202 = arith.subf %192, %201 : vector<8x256xf32>
    %203 = arith.mulf %194, %194 : vector<8x256xf32>
    %cst_148 = arith.constant 5.000000e-01 : f32
    %204 = vector.broadcast %cst_148 : f32 to vector<8x256xf32>
    %205 = arith.mulf %204, %203 : vector<8x256xf32>
    %206 = vector.extract_strided_slice %0 {offsets = [24, 0], sizes = [8, 1], strides = [1, 1]} : vector<32x1xf32> to vector<8x1xf32>
    %207 = arith.mulf %202, %202 : vector<8x256xf32>
    %208 = vector.broadcast %206 : vector<8x1xf32> to vector<8x256xf32>
    %209 = arith.mulf %208, %207 : vector<8x256xf32>
    %210 = arith.addf %205, %209 : vector<8x256xf32>
    %c24_149 = arith.constant 24 : index
    %c0_150 = arith.constant 0 : index
    %211 = vector.load %arg6[%c24_149, %c0_150] : memref<32x256xf32, #tpu.memory_space<vmem>>, vector<8x256xf32>
    %212 = arith.addf %211, %210 : vector<8x256xf32>
    %c24_151 = arith.constant 24 : index
    %c0_152 = arith.constant 0 : index
    %213 = vector.load %arg6[%c24_151, %c0_152] : memref<32x256xf32, #tpu.memory_space<vmem>>, vector<8x256xf32>
    tpu.vector_store %arg6[%c24_151, %c0_152], %212 {strides = array<i32>} : memref<32x256xf32, #tpu.memory_space<vmem>>, vector<8x256xf32>,
    %214 = arith.subf %192, %110 : vector<8x256xf32>
    %215 = math.exp %214 : vector<8x256xf32>
    %c24_153 = arith.constant 24 : index
    %c0_154 = arith.constant 0 : index
    %216 = vector.load %arg8[%c24_153, %c0_154] : memref<32x256xf32, #tpu.memory_space<vmem>>, vector<8x256xf32>
    tpu.vector_store %arg8[%c24_153, %c0_154], %215 {strides = array<i32>} : memref<32x256xf32, #tpu.memory_space<vmem>>, vector<8x256xf32>,
    %217 = arith.addf %190, %215 : vector<8x256xf32>
    %218 = tpu.reciprocal %217 : vector<8x256xf32> -> vector<8x256xf32>
    %c0_155 = arith.constant 0 : index
    %c0_156 = arith.constant 0 : index
    %219 = vector.load %arg8[%c0_155, %c0_156] : memref<32x256xf32, #tpu.memory_space<vmem>>, vector<8x256xf32>
    %220 = arith.mulf %219, %218 : vector<8x256xf32>
    %c0_157 = arith.constant 0 : index
    %c0_158 = arith.constant 0 : index
    %221 = vector.load %arg7[%c0_157, %c0_158] : memref<32x256xf32, #tpu.memory_space<vmem>>, vector<8x256xf32>
    %cst_159 = arith.constant 0.699999988 : f32
    %222 = vector.broadcast %cst_159 : f32 to vector<8x256xf32>
    %223 = arith.mulf %222, %221 : vector<8x256xf32>
    %224 = arith.addf %220, %223 : vector<8x256xf32>
    %c0_160 = arith.constant 0 : index
    %c0_161 = arith.constant 0 : index
    %225 = vector.load %arg7[%c0_160, %c0_161] : memref<32x256xf32, #tpu.memory_space<vmem>>, vector<8x256xf32>
    tpu.vector_store %arg7[%c0_160, %c0_161], %224 {strides = array<i32>} : memref<32x256xf32, #tpu.memory_space<vmem>>, vector<8x256xf32>,
    %c8_162 = arith.constant 8 : index
    %c0_163 = arith.constant 0 : index
    %226 = vector.load %arg8[%c8_162, %c0_163] : memref<32x256xf32, #tpu.memory_space<vmem>>, vector<8x256xf32>
    %227 = arith.mulf %226, %218 : vector<8x256xf32>
    %c8_164 = arith.constant 8 : index
    %c0_165 = arith.constant 0 : index
    %228 = vector.load %arg7[%c8_164, %c0_165] : memref<32x256xf32, #tpu.memory_space<vmem>>, vector<8x256xf32>
    %cst_166 = arith.constant 0.699999988 : f32
    %229 = vector.broadcast %cst_166 : f32 to vector<8x256xf32>
    %230 = arith.mulf %229, %228 : vector<8x256xf32>
    %231 = arith.addf %227, %230 : vector<8x256xf32>
    %c8_167 = arith.constant 8 : index
    %c0_168 = arith.constant 0 : index
    %232 = vector.load %arg7[%c8_167, %c0_168] : memref<32x256xf32, #tpu.memory_space<vmem>>, vector<8x256xf32>
    tpu.vector_store %arg7[%c8_167, %c0_168], %231 {strides = array<i32>} : memref<32x256xf32, #tpu.memory_space<vmem>>, vector<8x256xf32>,
    %c16_169 = arith.constant 16 : index
    %c0_170 = arith.constant 0 : index
    %233 = vector.load %arg8[%c16_169, %c0_170] : memref<32x256xf32, #tpu.memory_space<vmem>>, vector<8x256xf32>
    %234 = arith.mulf %233, %218 : vector<8x256xf32>
    %c16_171 = arith.constant 16 : index
    %c0_172 = arith.constant 0 : index
    %235 = vector.load %arg7[%c16_171, %c0_172] : memref<32x256xf32, #tpu.memory_space<vmem>>, vector<8x256xf32>
    %cst_173 = arith.constant 0.699999988 : f32
    %236 = vector.broadcast %cst_173 : f32 to vector<8x256xf32>
    %237 = arith.mulf %236, %235 : vector<8x256xf32>
    %238 = arith.addf %234, %237 : vector<8x256xf32>
    %c16_174 = arith.constant 16 : index
    %c0_175 = arith.constant 0 : index
    %239 = vector.load %arg7[%c16_174, %c0_175] : memref<32x256xf32, #tpu.memory_space<vmem>>, vector<8x256xf32>
    tpu.vector_store %arg7[%c16_174, %c0_175], %238 {strides = array<i32>} : memref<32x256xf32, #tpu.memory_space<vmem>>, vector<8x256xf32>,
    %c24_176 = arith.constant 24 : index
    %c0_177 = arith.constant 0 : index
    %240 = vector.load %arg8[%c24_176, %c0_177] : memref<32x256xf32, #tpu.memory_space<vmem>>, vector<8x256xf32>
    %241 = arith.mulf %240, %218 : vector<8x256xf32>
    %c24_178 = arith.constant 24 : index
    %c0_179 = arith.constant 0 : index
    %242 = vector.load %arg7[%c24_178, %c0_179] : memref<32x256xf32, #tpu.memory_space<vmem>>, vector<8x256xf32>
    %cst_180 = arith.constant 0.699999988 : f32
    %243 = vector.broadcast %cst_180 : f32 to vector<8x256xf32>
    %244 = arith.mulf %243, %242 : vector<8x256xf32>
    %245 = arith.addf %241, %244 : vector<8x256xf32>
    %c24_181 = arith.constant 24 : index
    %c0_182 = arith.constant 0 : index
    %246 = vector.load %arg7[%c24_181, %c0_182] : memref<32x256xf32, #tpu.memory_space<vmem>>, vector<8x256xf32>
    tpu.vector_store %arg7[%c24_181, %c0_182], %245 {strides = array<i32>} : memref<32x256xf32, #tpu.memory_space<vmem>>, vector<8x256xf32>,
    %c0_183 = arith.constant 0 : index
    %c0_184 = arith.constant 0 : index
    %c0_185 = arith.constant 0 : index
    %247 = vector.load %arg1[%c0_183, %c0_184, %c0_185] : memref<3x32x256xf32, #tpu.memory_space<vmem>>, vector<1x8x256xf32>
    %248 = vector.shape_cast %247 : vector<1x8x256xf32> to vector<8x256xf32>
    %c0_186 = arith.constant 0 : index
    %c0_187 = arith.constant 0 : index
    %249 = vector.load %arg2[%c0_186, %c0_187] : memref<32x256xf32, #tpu.memory_space<vmem>>, vector<8x256xf32>
    %250 = arith.subf %248, %249 : vector<8x256xf32>
    %c0_188 = arith.constant 0 : index
    %c0_189 = arith.constant 0 : index
    %251 = vector.load %arg7[%c0_188, %c0_189] : memref<32x256xf32, #tpu.memory_space<vmem>>, vector<8x256xf32>
    %cst_190 = arith.constant 3.000000e-01 : f32
    %252 = vector.broadcast %cst_190 : f32 to vector<8x256xf32>
    %253 = arith.mulf %252, %251 : vector<8x256xf32>
    %c0_191 = arith.constant 0 : index
    %c0_192 = arith.constant 0 : index
    %254 = vector.load %arg3[%c0_191, %c0_192] : memref<32x256xf32, #tpu.memory_space<vmem>>, vector<8x256xf32>
    %cst_193 = arith.constant 4.900000e-01 : f32
    %255 = vector.broadcast %cst_193 : f32 to vector<8x256xf32>
    %256 = arith.mulf %255, %254 : vector<8x256xf32>
    %257 = arith.addf %253, %256 : vector<8x256xf32>
    %258 = arith.subf %248, %257 : vector<8x256xf32>
    %259 = arith.mulf %250, %250 : vector<8x256xf32>
    %cst_194 = arith.constant 5.000000e-01 : f32
    %260 = vector.broadcast %cst_194 : f32 to vector<8x256xf32>
    %261 = arith.mulf %260, %259 : vector<8x256xf32>
    %262 = vector.extract_strided_slice %0 {offsets = [0, 0], sizes = [8, 1], strides = [1, 1]} : vector<32x1xf32> to vector<8x1xf32>
    %263 = arith.mulf %258, %258 : vector<8x256xf32>
    %264 = vector.broadcast %262 : vector<8x1xf32> to vector<8x256xf32>
    %265 = arith.mulf %264, %263 : vector<8x256xf32>
    %266 = arith.addf %261, %265 : vector<8x256xf32>
    %c0_195 = arith.constant 0 : index
    %c0_196 = arith.constant 0 : index
    %267 = vector.load %arg6[%c0_195, %c0_196] : memref<32x256xf32, #tpu.memory_space<vmem>>, vector<8x256xf32>
    %268 = arith.addf %267, %266 : vector<8x256xf32>
    %c0_197 = arith.constant 0 : index
    %c0_198 = arith.constant 0 : index
    %269 = vector.load %arg6[%c0_197, %c0_198] : memref<32x256xf32, #tpu.memory_space<vmem>>, vector<8x256xf32>
    tpu.vector_store %arg6[%c0_197, %c0_198], %268 {strides = array<i32>} : memref<32x256xf32, #tpu.memory_space<vmem>>, vector<8x256xf32>,
    %c0_199 = arith.constant 0 : index
    %c8_200 = arith.constant 8 : index
    %c0_201 = arith.constant 0 : index
    %270 = vector.load %arg1[%c0_199, %c8_200, %c0_201] : memref<3x32x256xf32, #tpu.memory_space<vmem>>, vector<1x8x256xf32>
    %271 = vector.shape_cast %270 : vector<1x8x256xf32> to vector<8x256xf32>
    %c8_202 = arith.constant 8 : index
    %c0_203 = arith.constant 0 : index
    %272 = vector.load %arg2[%c8_202, %c0_203] : memref<32x256xf32, #tpu.memory_space<vmem>>, vector<8x256xf32>
    %273 = arith.subf %271, %272 : vector<8x256xf32>
    %c8_204 = arith.constant 8 : index
    %c0_205 = arith.constant 0 : index
    %274 = vector.load %arg7[%c8_204, %c0_205] : memref<32x256xf32, #tpu.memory_space<vmem>>, vector<8x256xf32>
    %cst_206 = arith.constant 3.000000e-01 : f32
    %275 = vector.broadcast %cst_206 : f32 to vector<8x256xf32>
    %276 = arith.mulf %275, %274 : vector<8x256xf32>
    %c8_207 = arith.constant 8 : index
    %c0_208 = arith.constant 0 : index
    %277 = vector.load %arg3[%c8_207, %c0_208] : memref<32x256xf32, #tpu.memory_space<vmem>>, vector<8x256xf32>
    %cst_209 = arith.constant 4.900000e-01 : f32
    %278 = vector.broadcast %cst_209 : f32 to vector<8x256xf32>
    %279 = arith.mulf %278, %277 : vector<8x256xf32>
    %280 = arith.addf %276, %279 : vector<8x256xf32>
    %281 = arith.subf %271, %280 : vector<8x256xf32>
    %282 = arith.mulf %273, %273 : vector<8x256xf32>
    %cst_210 = arith.constant 5.000000e-01 : f32
    %283 = vector.broadcast %cst_210 : f32 to vector<8x256xf32>
    %284 = arith.mulf %283, %282 : vector<8x256xf32>
    %285 = vector.extract_strided_slice %0 {offsets = [8, 0], sizes = [8, 1], strides = [1, 1]} : vector<32x1xf32> to vector<8x1xf32>
    %286 = arith.mulf %281, %281 : vector<8x256xf32>
    %287 = vector.broadcast %285 : vector<8x1xf32> to vector<8x256xf32>
    %288 = arith.mulf %287, %286 : vector<8x256xf32>
    %289 = arith.addf %284, %288 : vector<8x256xf32>
    %c8_211 = arith.constant 8 : index
    %c0_212 = arith.constant 0 : index
    %290 = vector.load %arg6[%c8_211, %c0_212] : memref<32x256xf32, #tpu.memory_space<vmem>>, vector<8x256xf32>
    %291 = arith.addf %290, %289 : vector<8x256xf32>
    %c8_213 = arith.constant 8 : index
    %c0_214 = arith.constant 0 : index
    %292 = vector.load %arg6[%c8_213, %c0_214] : memref<32x256xf32, #tpu.memory_space<vmem>>, vector<8x256xf32>
    tpu.vector_store %arg6[%c8_213, %c0_214], %291 {strides = array<i32>} : memref<32x256xf32, #tpu.memory_space<vmem>>, vector<8x256xf32>,
    %c0_215 = arith.constant 0 : index
    %c16_216 = arith.constant 16 : index
    %c0_217 = arith.constant 0 : index
    %293 = vector.load %arg1[%c0_215, %c16_216, %c0_217] : memref<3x32x256xf32, #tpu.memory_space<vmem>>, vector<1x8x256xf32>
    %294 = vector.shape_cast %293 : vector<1x8x256xf32> to vector<8x256xf32>
    %c16_218 = arith.constant 16 : index
    %c0_219 = arith.constant 0 : index
    %295 = vector.load %arg2[%c16_218, %c0_219] : memref<32x256xf32, #tpu.memory_space<vmem>>, vector<8x256xf32>
    %296 = arith.subf %294, %295 : vector<8x256xf32>
    %c16_220 = arith.constant 16 : index
    %c0_221 = arith.constant 0 : index
    %297 = vector.load %arg7[%c16_220, %c0_221] : memref<32x256xf32, #tpu.memory_space<vmem>>, vector<8x256xf32>
    %cst_222 = arith.constant 3.000000e-01 : f32
    %298 = vector.broadcast %cst_222 : f32 to vector<8x256xf32>
    %299 = arith.mulf %298, %297 : vector<8x256xf32>
    %c16_223 = arith.constant 16 : index
    %c0_224 = arith.constant 0 : index
    %300 = vector.load %arg3[%c16_223, %c0_224] : memref<32x256xf32, #tpu.memory_space<vmem>>, vector<8x256xf32>
    %cst_225 = arith.constant 4.900000e-01 : f32
    %301 = vector.broadcast %cst_225 : f32 to vector<8x256xf32>
    %302 = arith.mulf %301, %300 : vector<8x256xf32>
    %303 = arith.addf %299, %302 : vector<8x256xf32>
    %304 = arith.subf %294, %303 : vector<8x256xf32>
    %305 = arith.mulf %296, %296 : vector<8x256xf32>
    %cst_226 = arith.constant 5.000000e-01 : f32
    %306 = vector.broadcast %cst_226 : f32 to vector<8x256xf32>
    %307 = arith.mulf %306, %305 : vector<8x256xf32>
    %308 = vector.extract_strided_slice %0 {offsets = [16, 0], sizes = [8, 1], strides = [1, 1]} : vector<32x1xf32> to vector<8x1xf32>
    %309 = arith.mulf %304, %304 : vector<8x256xf32>
    %310 = vector.broadcast %308 : vector<8x1xf32> to vector<8x256xf32>
    %311 = arith.mulf %310, %309 : vector<8x256xf32>
    %312 = arith.addf %307, %311 : vector<8x256xf32>
    %c16_227 = arith.constant 16 : index
    %c0_228 = arith.constant 0 : index
    %313 = vector.load %arg6[%c16_227, %c0_228] : memref<32x256xf32, #tpu.memory_space<vmem>>, vector<8x256xf32>
    %314 = arith.addf %313, %312 : vector<8x256xf32>
    %c16_229 = arith.constant 16 : index
    %c0_230 = arith.constant 0 : index
    %315 = vector.load %arg6[%c16_229, %c0_230] : memref<32x256xf32, #tpu.memory_space<vmem>>, vector<8x256xf32>
    tpu.vector_store %arg6[%c16_229, %c0_230], %314 {strides = array<i32>} : memref<32x256xf32, #tpu.memory_space<vmem>>, vector<8x256xf32>,
    %c0_231 = arith.constant 0 : index
    %c24_232 = arith.constant 24 : index
    %c0_233 = arith.constant 0 : index
    %316 = vector.load %arg1[%c0_231, %c24_232, %c0_233] : memref<3x32x256xf32, #tpu.memory_space<vmem>>, vector<1x8x256xf32>
    %317 = vector.shape_cast %316 : vector<1x8x256xf32> to vector<8x256xf32>
    %c24_234 = arith.constant 24 : index
    %c0_235 = arith.constant 0 : index
    %318 = vector.load %arg2[%c24_234, %c0_235] : memref<32x256xf32, #tpu.memory_space<vmem>>, vector<8x256xf32>
    %319 = arith.subf %317, %318 : vector<8x256xf32>
    %c24_236 = arith.constant 24 : index
    %c0_237 = arith.constant 0 : index
    %320 = vector.load %arg7[%c24_236, %c0_237] : memref<32x256xf32, #tpu.memory_space<vmem>>, vector<8x256xf32>
    %cst_238 = arith.constant 3.000000e-01 : f32
    %321 = vector.broadcast %cst_238 : f32 to vector<8x256xf32>
    %322 = arith.mulf %321, %320 : vector<8x256xf32>
    %c24_239 = arith.constant 24 : index
    %c0_240 = arith.constant 0 : index
    %323 = vector.load %arg3[%c24_239, %c0_240] : memref<32x256xf32, #tpu.memory_space<vmem>>, vector<8x256xf32>
    %cst_241 = arith.constant 4.900000e-01 : f32
    %324 = vector.broadcast %cst_241 : f32 to vector<8x256xf32>
    %325 = arith.mulf %324, %323 : vector<8x256xf32>
    %326 = arith.addf %322, %325 : vector<8x256xf32>
    %327 = arith.subf %317, %326 : vector<8x256xf32>
    %328 = arith.mulf %319, %319 : vector<8x256xf32>
    %cst_242 = arith.constant 5.000000e-01 : f32
    %329 = vector.broadcast %cst_242 : f32 to vector<8x256xf32>
    %330 = arith.mulf %329, %328 : vector<8x256xf32>
    %331 = vector.extract_strided_slice %0 {offsets = [24, 0], sizes = [8, 1], strides = [1, 1]} : vector<32x1xf32> to vector<8x1xf32>
    %332 = arith.mulf %327, %327 : vector<8x256xf32>
    %333 = vector.broadcast %331 : vector<8x1xf32> to vector<8x256xf32>
    %334 = arith.mulf %333, %332 : vector<8x256xf32>
    %335 = arith.addf %330, %334 : vector<8x256xf32>
    %c24_243 = arith.constant 24 : index
    %c0_244 = arith.constant 0 : index
    %336 = vector.load %arg6[%c24_243, %c0_244] : memref<32x256xf32, #tpu.memory_space<vmem>>, vector<8x256xf32>
    %337 = arith.addf %336, %335 : vector<8x256xf32>
    %c24_245 = arith.constant 24 : index
    %c0_246 = arith.constant 0 : index
    %338 = vector.load %arg6[%c24_245, %c0_246] : memref<32x256xf32, #tpu.memory_space<vmem>>, vector<8x256xf32>
    tpu.vector_store %arg6[%c24_245, %c0_246], %337 {strides = array<i32>} : memref<32x256xf32, #tpu.memory_space<vmem>>, vector<8x256xf32>,
    %c0_247 = arith.constant 0 : index
    %c0_248 = arith.constant 0 : index
    %339 = vector.load %arg6[%c0_247, %c0_248] : memref<32x256xf32, #tpu.memory_space<vmem>>, vector<8x256xf32>
    %340 = vector.shape_cast %339 : vector<8x256xf32> to vector<1x8x256xf32>
    %cst_249 = arith.constant dense<0.000000e+00> : vector<1xf32>
    %341 = vector.multi_reduction <add>, %340, %cst_249 [1, 2] : vector<1x8x256xf32> to vector<1xf32>
    %342 = vector.shape_cast %341 : vector<1xf32> to vector<1x1x1xf32>
    %343 = vector.extract %342[0, 0, 0] : f32 from vector<1x1x1xf32>
    %c8_250 = arith.constant 8 : index
    %c0_251 = arith.constant 0 : index
    %344 = vector.load %arg6[%c8_250, %c0_251] : memref<32x256xf32, #tpu.memory_space<vmem>>, vector<8x256xf32>
    %345 = vector.shape_cast %344 : vector<8x256xf32> to vector<1x8x256xf32>
    %cst_252 = arith.constant dense<0.000000e+00> : vector<1xf32>
    %346 = vector.multi_reduction <add>, %345, %cst_252 [1, 2] : vector<1x8x256xf32> to vector<1xf32>
    %347 = vector.shape_cast %346 : vector<1xf32> to vector<1x1x1xf32>
    %348 = vector.extract %347[0, 0, 0] : f32 from vector<1x1x1xf32>
    %349 = arith.addf %343, %348 : f32
    %c16_253 = arith.constant 16 : index
    %c0_254 = arith.constant 0 : index
    %350 = vector.load %arg6[%c16_253, %c0_254] : memref<32x256xf32, #tpu.memory_space<vmem>>, vector<8x256xf32>
    %351 = vector.shape_cast %350 : vector<8x256xf32> to vector<1x8x256xf32>
    %cst_255 = arith.constant dense<0.000000e+00> : vector<1xf32>
    %352 = vector.multi_reduction <add>, %351, %cst_255 [1, 2] : vector<1x8x256xf32> to vector<1xf32>
    %353 = vector.shape_cast %352 : vector<1xf32> to vector<1x1x1xf32>
    %354 = vector.extract %353[0, 0, 0] : f32 from vector<1x1x1xf32>
    %355 = arith.addf %349, %354 : f32
    %c24_256 = arith.constant 24 : index
    %c0_257 = arith.constant 0 : index
    %356 = vector.load %arg6[%c24_256, %c0_257] : memref<32x256xf32, #tpu.memory_space<vmem>>, vector<8x256xf32>
    %357 = vector.shape_cast %356 : vector<8x256xf32> to vector<1x8x256xf32>
    %cst_258 = arith.constant dense<0.000000e+00> : vector<1xf32>
    %358 = vector.multi_reduction <add>, %357, %cst_258 [1, 2] : vector<1x8x256xf32> to vector<1xf32>
    %359 = vector.shape_cast %358 : vector<1xf32> to vector<1x1x1xf32>
    %360 = vector.extract %359[0, 0, 0] : f32 from vector<1x1x1xf32>
    %361 = arith.addf %355, %360 : f32
    %362 = vector.broadcast %361 : f32 to vector<1x1x128xf32>
    %c0_259 = arith.constant 0 : index
    %c0_260 = arith.constant 0 : index
    %c0_261 = arith.constant 0 : index
    %363 = vector.load %arg5[%c0_259, %c0_260, %c0_261] : memref<1x1x128xf32, #tpu.memory_space<vmem>>, vector<1x1x128xf32>
    tpu.vector_store %arg5[%c0_259, %c0_260, %c0_261], %362 {strides = array<i32>} : memref<1x1x128xf32, #tpu.memory_space<vmem>>, vector<1x1x128xf32>,
    return
  }
  func.func @transform_0(%arg0: i32) -> (i32, i32, i32) {
    %c0_i32 = arith.constant 0 : i32
    %c0_i32_0 = arith.constant 0 : i32
    %c0_i32_1 = arith.constant 0 : i32
    return %c0_i32, %c0_i32_0, %arg0 : i32, i32, i32
  }
  func.func @transform_1(%arg0: i32) -> (i32, i32) {
    %c0_i32 = arith.constant 0 : i32
    %c0_i32_0 = arith.constant 0 : i32
    return %c0_i32, %arg0 : i32, i32
  }
  func.func @transform_2(%arg0: i32) -> (i32, i32) {
    %c0_i32 = arith.constant 0 : i32
    %c0_i32_0 = arith.constant 0 : i32
    return %c0_i32, %arg0 : i32, i32
  }
  func.func @transform_3(%arg0: i32) -> (i32, i32) {
    %c0_i32 = arith.constant 0 : i32
    %c0_i32_0 = arith.constant 0 : i32
    %c0_i32_1 = arith.constant 0 : i32
    return %c0_i32, %c0_i32_0 : i32, i32
  }
  func.func @transform_4(%arg0: i32) -> (i32, i32, i32) {
    %c0_i32 = arith.constant 0 : i32
    %c0_i32_0 = arith.constant 0 : i32
    %c0_i32_1 = arith.constant 0 : i32
    return %arg0, %c0_i32, %c0_i32_0 : i32, i32, i32
  }
}

</mosaic_0001>

<llo_original>
// kernel: joints_mse_loss_distillation.1
$region0: #{joints_mse_loss_distillation.1}
  #allocation0 [shape = 'u32[]', space=smem, size = 0x4, offset = 0x4, fixed_abs, tag = 'smem constant byte address 0x4 - core index']
  #allocation1 [shape = 'u32[72,128]{1,0:T(1,128)}', space=vmem, size = 0x9000, scoped, tag = 'internal scratch']
  #allocation2 [shape = 'f32[32,256]{1,0:T(8,128)}', space=vmem, size = 0x8000, scoped, tag = 'scratch operand']
  #allocation3 [shape = 'f32[32,256]{1,0:T(8,128)}', space=vmem, size = 0x8000, scoped, tag = 'scratch operand']
  #allocation4 [shape = 'f32[32,256]{1,0:T(8,128)}', space=vmem, size = 0x8000, scoped, tag = 'scratch operand']
  %s0 = inlined_call_operand.vmem [shape: f32[3,32,1024], index: 0, kind: input, shape index: {}]
  %s1 = inlined_call_operand.vmem [shape: f32[32,1024], index: 1, kind: input, shape index: {}]
  %s2 = inlined_call_operand.vmem [shape: f32[32,1024], index: 2, kind: input, shape index: {}]
  %s3 = inlined_call_operand.vmem [shape: f32[32,1], index: 3, kind: input, shape index: {}]
  %s4 = inlined_call_operand.vmem [shape: f32[4,1,128], index: 4, kind: output, shape index: {}]
  %s5 = sld [smem:[#allocation0]]
  $region118: #{joints_mse_loss_distillation.1} parent=0
    _
  %s7 = ssub.s32 1, %s5
  %s8 = scalar_select 0, %s7, %s5
  $region1: #{joints_mse_loss_distillation.1} parent=0
    #allocation5 [shape = 'u8[196608]{0}', space=vmem, size = 0x30000, scoped, tag = 'input window, operand 0']
    #allocation6 [shape = 'u8[65536]{0}', space=vmem, size = 0x10000, scoped, tag = 'input window, operand 1']
    #allocation7 [shape = 'u8[65536]{0}', space=vmem, size = 0x10000, scoped, tag = 'input window, operand 2']
    loop: start=0, step=1, limit=6
    $region2: #{joints_mse_loss_distillation.1} parent=1 // loop_pre_header
      _
    $region3: #{joints_mse_loss_distillation.1} parent=1 // loop_header
      %s10 = sphi 0, %s14
      %p11 = scmp.ge.s32.totalorder %s10, 6
      %s20 = sphi 0, %s22
      %s23 = sphi 0, %s20
      %s24 = sphi 0, %s23
      %s40 = sphi 0, %s24
      %s46 = sphi 0, %s48
      %s49 = sphi 0, %s46
      %s50 = sphi 0, %s49
      %s66 = sphi 0, %s50
      %s72 = sphi 0, %s74
      %s75 = sphi 0, %s72
      %s76 = sphi 0, %s75
      %s92 = sphi 0, %s76
      %s96 = sphi 0, %s96
      %s98 = sphi 0, %s96
      %s99 = sphi 0, %s98
      %s113 = sphi 0, %s99
      %s119 = sphi 0, %s121
      %s122 = sphi 0, %s119
      %s123 = sphi 0, %s122
      %s139 = sphi 0, %s123
    $region4: #{joints_mse_loss_distillation.1} parent=1 // loop_header_branch
      %13 = sbr.rel (%p11) target = $region8
    $region5: #{joints_mse_loss_distillation.1} parent=1 // loop_body
      %s15 = ssub.s32 %s10, 1
      %s16 = ssub.s32 %s10, 2
      %s17 = sadd.s32 %s10, 1
      %s18 = ssub.s32 %s10, %s17
      %p19 = scmp.eq.s32.totalorder %s18, 0
      %s21 = sadd.s32 %s20, 1
      %s22 = scalar_select %p19, %s20, %s21
      %p25 = pneg %p19
      %p26 = scmp.eq.s32.totalorder %s10, 3
      %p27 = por %p25, %p26
      %p28 = scmp.ne.s32.totalorder %s20, %s23
      %p29 = scmp.eq.s32.totalorder %s10, 0
      %p30 = por %p28, %p29
      %p31 = scmp.ne.s32.totalorder %s20, %s23
      %p32 = scmp.eq.s32.totalorder %s15, 3
      %p33 = por %p31, %p32
      %p34 = scmp.ne.s32.totalorder %s23, %s24
      %p35 = scmp.eq.s32.totalorder %s15, 0
      %p36 = por %p34, %p35
      %p37 = scmp.ne.s32.totalorder %s23, %s24
      %p38 = scmp.eq.s32.totalorder %s16, 3
      %p39 = por %p37, %p38
      %p41 = scmp.ne.s32.totalorder %s24, %s40
      %p42 = scmp.eq.s32.totalorder %s16, 0
      %p43 = por %p41, %p42
      %s44 = ssub.s32 %s10, %s17
      %p45 = scmp.eq.s32.totalorder %s44, 0
      %s47 = sadd.s32 %s46, 1
      %s48 = scalar_select %p45, %s46, %s47
      %p51 = pneg %p45
      %p52 = scmp.eq.s32.totalorder %s10, 3
      %p53 = por %p51, %p52
      %p54 = scmp.ne.s32.totalorder %s46, %s49
      %p55 = scmp.eq.s32.totalorder %s10, 0
      %p56 = por %p54, %p55
      %p57 = scmp.ne.s32.totalorder %s46, %s49
      %p58 = scmp.eq.s32.totalorder %s15, 3
      %p59 = por %p57, %p58
      %p60 = scmp.ne.s32.totalorder %s49, %s50
      %p61 = scmp.eq.s32.totalorder %s15, 0
      %p62 = por %p60, %p61
      %p63 = scmp.ne.s32.totalorder %s49, %s50
      %p64 = scmp.eq.s32.totalorder %s16, 3
      %p65 = por %p63, %p64
      %p67 = scmp.ne.s32.totalorder %s50, %s66
      %p68 = scmp.eq.s32.totalorder %s16, 0
      %p69 = por %p67, %p68
      %s70 = ssub.s32 %s10, %s17
      %p71 = scmp.eq.s32.totalorder %s70, 0
      %s73 = sadd.s32 %s72, 1
      %s74 = scalar_select %p71, %s72, %s73
      %p77 = pneg %p71
      %p78 = scmp.eq.s32.totalorder %s10, 3
      %p79 = por %p77, %p78
      %p80 = scmp.ne.s32.totalorder %s72, %s75
      %p81 = scmp.eq.s32.totalorder %s10, 0
      %p82 = por %p80, %p81
      %p83 = scmp.ne.s32.totalorder %s72, %s75
      %p84 = scmp.eq.s32.totalorder %s15, 3
      %p85 = por %p83, %p84
      %p86 = scmp.ne.s32.totalorder %s75, %s76
      %p87 = scmp.eq.s32.totalorder %s15, 0
      %p88 = por %p86, %p87
      %p89 = scmp.ne.s32.totalorder %s75, %s76
      %p90 = scmp.eq.s32.totalorder %s16, 3
      %p91 = por %p89, %p90
      %p93 = scmp.ne.s32.totalorder %s76, %s92
      %p94 = scmp.eq.s32.totalorder %s16, 0
      %p95 = por %p93, %p94
      %s97 = sadd.s32 %s96, 1
      %p100 = scmp.eq.s32.totalorder %s10, 3
      %p101 = scmp.ne.s32.totalorder %s96, %s98
      %p102 = scmp.eq.s32.totalorder %s10, 0
      %p103 = por %p101, %p102
      %p104 = scmp.ne.s32.totalorder %s96, %s98
      %p105 = scmp.eq.s32.totalorder %s15, 3
      %p106 = por %p104, %p105
      %p107 = scmp.ne.s32.totalorder %s98, %s99
      %p108 = scmp.eq.s32.totalorder %s15, 0
      %p109 = por %p107, %p108
      %p110 = scmp.ne.s32.totalorder %s98, %s99
      %p111 = scmp.eq.s32.totalorder %s16, 3
      %p112 = por %p110, %p111
      %p114 = scmp.ne.s32.totalorder %s99, %s113
      %p115 = scmp.eq.s32.totalorder %s16, 0
      %p116 = por %p114, %p115
      %s117 = ssub.s32 %s10, %s17
      %p118 = scmp.eq.s32.totalorder %s117, 0
      %s120 = sadd.s32 %s119, 1
      %s121 = scalar_select %p118, %s119, %s120
      %p124 = pneg %p118
      %p125 = scmp.eq.s32.totalorder %s10, 3
      %p126 = por %p124, %p125
      %p127 = scmp.ne.s32.totalorder %s119, %s122
      %p128 = scmp.eq.s32.totalorder %s10, 0
      %p129 = por %p127, %p128
      %p130 = scmp.ne.s32.totalorder %s119, %s122
      %p131 = scmp.eq.s32.totalorder %s15, 3
      %p132 = por %p130, %p131
      %p133 = scmp.ne.s32.totalorder %s122, %s123
      %p134 = scmp.eq.s32.totalorder %s15, 0
      %p135 = por %p133, %p134
      %p136 = scmp.ne.s32.totalorder %s122, %s123
      %p137 = scmp.eq.s32.totalorder %s16, 3
      %p138 = por %p136, %p137
      %p140 = scmp.ne.s32.totalorder %s123, %s139
      %p141 = scmp.eq.s32.totalorder %s16, 0
      %p142 = por %p140, %p141
      %p143 = scmp.le.s32.totalorder 1, %s10
      %p144 = scmp.lt.s32.totalorder %s10, 5
      %p145 = pnand %p143, %p144
      %p146 = pneg %p145
      // Predicated region
      $region9: #{joints_mse_loss_distillation.1} parent=5 // pred_check
        _
      $region10: #{joints_mse_loss_distillation.1} parent=5 // pred_check_branch
        %148 = sbr.rel (%p145) target = $region12
      $region11: #{joints_mse_loss_distillation.1} parent=5 // pred_region
        %s149 = ssub.s32 %s10, 1
        // Predicated region
        $region13: #{joints_mse_loss_distillation.1} parent=11 // pred_check
          %p150 = pneg %p109
        $region14: #{joints_mse_loss_distillation.1} parent=11 // pred_check_branch
          %152 = sbr.rel (%p150) target = $region16
        $region15: #{joints_mse_loss_distillation.1} parent=11 // pred_region
          _
        $region16: #{joints_mse_loss_distillation.1} parent=11 // pred_fallthru
          _
      $region12: #{joints_mse_loss_distillation.1} parent=5 // pred_fallthru
        _
      %p153 = scmp.lt.s32.totalorder %s10, 4
      // Predicated region
      $region17: #{joints_mse_loss_distillation.1} parent=5 // pred_check
        %p154 = pneg %p153
      $region18: #{joints_mse_loss_distillation.1} parent=5 // pred_check_branch
        %156 = sbr.rel (%p154) target = $region20
      $region19: #{joints_mse_loss_distillation.1} parent=5 // pred_region
        // Predicated region
        $region21: #{joints_mse_loss_distillation.1} parent=19 // pred_check
          %p157 = pneg %p30
        $region22: #{joints_mse_loss_distillation.1} parent=19 // pred_check_branch
          %159 = sbr.rel (%p157) target = $region24
        $region23: #{joints_mse_loss_distillation.1} parent=19 // pred_region
          %s160 = sand.u32 %s20, 1
          %s161 = sand.u32 %s20, 1
          %s162 = smul.addr %s161, 192
          %s163 = scalar_lea.vmem [#allocation5], %s162
          %s164 = smul.u32 2, %s10
          %s165 = smul.addr %s164, 8
          %s166 = scalar_lea.vmem %s0, %s165
          // Predicated region
          $region25: #{joints_mse_loss_distillation.1} parent=23 // pred_check
            _
          $region26: #{joints_mse_loss_distillation.1} parent=23 // pred_check_branch
            %168 = sbr.rel (0) target = $region28
          $region27: #{joints_mse_loss_distillation.1} parent=23 // pred_region
            // Predicated region
            $region29: #{joints_mse_loss_distillation.1} parent=27 // pred_check
              _
            $region30: #{joints_mse_loss_distillation.1} parent=27 // pred_check_branch
              %170 = sbr.rel (0) target = $region32
            $region31: #{joints_mse_loss_distillation.1} parent=27 // pred_region
              loop: start=0, step=1, limit=1
              $region33: #{joints_mse_loss_distillation.1} parent=31 // loop_pre_header
                _
              $region34: #{joints_mse_loss_distillation.1} parent=31 // loop_header
                %s172 = sphi 0, %s176
                %p173 = scmp.ge.s32.totalorder %s172, 1
                %s177 = sphi %s166, %s166
                %s178 = sphi %s163, %s163
              $region35: #{joints_mse_loss_distillation.1} parent=31 // loop_header_branch
                %175 = sbr.rel (%p173) target = $region39
              $region36: #{joints_mse_loss_distillation.1} parent=31 // loop_body
                %v179 = vld [vmem:[%s177] sm:$0xff]
                %180 = vst [vmem:[%s178] sm:$0xff] %v179
                %v181 = vld [vmem:[%s177 + $0x8] sm:$0xff]
                %182 = vst [vmem:[%s178 + $0x8] sm:$0xff] %v181
                %v183 = vld [vmem:[%s177 + $0x40] sm:$0xff]
                %184 = vst [vmem:[%s178 + $0x10] sm:$0xff] %v183
                %v185 = vld [vmem:[%s177 + $0x48] sm:$0xff]
                %186 = vst [vmem:[%s178 + $0x18] sm:$0xff] %v185
                %v187 = vld [vmem:[%s177 + $0x80] sm:$0xff]
                %188 = vst [vmem:[%s178 + $0x20] sm:$0xff] %v187
                %v189 = vld [vmem:[%s177 + $0x88] sm:$0xff]
                %190 = vst [vmem:[%s178 + $0x28] sm:$0xff] %v189
                %v191 = vld [vmem:[%s177 + $0xc0] sm:$0xff]
                %192 = vst [vmem:[%s178 + $0x30] sm:$0xff] %v191
                %v193 = vld [vmem:[%s177 + $0xc8] sm:$0xff]
                %194 = vst [vmem:[%s178 + $0x38] sm:$0xff] %v193
                %v195 = vld [vmem:[%s177 + $0x100] sm:$0xff]
                %196 = vst [vmem:[%s178 + $0x40] sm:$0xff] %v195
                %v197 = vld [vmem:[%s177 + $0x108] sm:$0xff]
                %198 = vst [vmem:[%s178 + $0x48] sm:$0xff] %v197
                %v199 = vld [vmem:[%s177 + $0x140] sm:$0xff]
                %200 = vst [vmem:[%s178 + $0x50] sm:$0xff] %v199
                %v201 = vld [vmem:[%s177 + $0x148] sm:$0xff]
                %202 = vst [vmem:[%s178 + $0x58] sm:$0xff] %v201
                %v203 = vld [vmem:[%s177 + $0x180] sm:$0xff]
                %204 = vst [vmem:[%s178 + $0x60] sm:$0xff] %v203
                %v205 = vld [vmem:[%s177 + $0x188] sm:$0xff]
                %206 = vst [vmem:[%s178 + $0x68] sm:$0xff] %v205
                %v207 = vld [vmem:[%s177 + $0x1c0] sm:$0xff]
                %208 = vst [vmem:[%s178 + $0x70] sm:$0xff] %v207
                %v209 = vld [vmem:[%s177 + $0x1c8] sm:$0xff]
                %210 = vst [vmem:[%s178 + $0x78] sm:$0xff] %v209
                %v211 = vld [vmem:[%s177 + $0x200] sm:$0xff]
                %212 = vst [vmem:[%s178 + $0x80] sm:$0xff] %v211
                %v213 = vld [vmem:[%s177 + $0x208] sm:$0xff]
                %214 = vst [vmem:[%s178 + $0x88] sm:$0xff] %v213
                %v215 = vld [vmem:[%s177 + $0x240] sm:$0xff]
                %216 = vst [vmem:[%s178 + $0x90] sm:$0xff] %v215
                %v217 = vld [vmem:[%s177 + $0x248] sm:$0xff]
                %218 = vst [vmem:[%s178 + $0x98] sm:$0xff] %v217
                %v219 = vld [vmem:[%s177 + $0x280] sm:$0xff]
                %220 = vst [vmem:[%s178 + $0xa0] sm:$0xff] %v219
                %v221 = vld [vmem:[%s177 + $0x288] sm:$0xff]
                %222 = vst [vmem:[%s178 + $0xa8] sm:$0xff] %v221
                %v223 = vld [vmem:[%s177 + $0x2c0] sm:$0xff]
                %224 = vst [vmem:[%s178 + $0xb0] sm:$0xff] %v223
                %v225 = vld [vmem:[%s177 + $0x2c8] sm:$0xff]
                %226 = vst [vmem:[%s178 + $0xb8] sm:$0xff] %v225
              $region37: #{joints_mse_loss_distillation.1} parent=31 // loop_footer
                %s176 = sadd.s32 1, %s172
              $region38: #{joints_mse_loss_distillation.1} parent=31 // loop_footer_branch
                %171 = sbr.rel target = $region34
              $region39: #{joints_mse_loss_distillation.1} parent=31 // loop_exit
                _
            $region32: #{joints_mse_loss_distillation.1} parent=27 // pred_fallthru
              _
            // Predicated region
            $region40: #{joints_mse_loss_distillation.1} parent=27 // pred_check
              _
            $region41: #{joints_mse_loss_distillation.1} parent=27 // pred_check_branch
              %228 = sbr.rel target = $region43
            $region42: #{joints_mse_loss_distillation.1} parent=27 // pred_region
              _
            $region43: #{joints_mse_loss_distillation.1} parent=27 // pred_fallthru
              _
          $region28: #{joints_mse_loss_distillation.1} parent=23 // pred_fallthru
            _
          %229 = vnop
        $region24: #{joints_mse_loss_distillation.1} parent=19 // pred_fallthru
          _
        // Predicated region
        $region44: #{joints_mse_loss_distillation.1} parent=19 // pred_check
          %p230 = pneg %p56
        $region45: #{joints_mse_loss_distillation.1} parent=19 // pred_check_branch
          %232 = sbr.rel (%p230) target = $region47
        $region46: #{joints_mse_loss_distillation.1} parent=19 // pred_region
          %s233 = sand.u32 %s46, 1
          %s234 = sand.u32 %s46, 1
          %s235 = smul.addr %s234, 64
          %s236 = scalar_lea.vmem [#allocation6], %s235
          %s237 = smul.u32 2, %s10
          %s238 = smul.addr %s237, 8
          %s239 = scalar_lea.vmem %s1, %s238
          // Predicated region
          $region48: #{joints_mse_loss_distillation.1} parent=46 // pred_check
            _
          $region49: #{joints_mse_loss_distillation.1} parent=46 // pred_check_branch
            %241 = sbr.rel (0) target = $region51
          $region50: #{joints_mse_loss_distillation.1} parent=46 // pred_region
            // Predicated region
            $region52: #{joints_mse_loss_distillation.1} parent=50 // pred_check
              _
            $region53: #{joints_mse_loss_distillation.1} parent=50 // pred_check_branch
              %243 = sbr.rel (0) target = $region55
            $region54: #{joints_mse_loss_distillation.1} parent=50 // pred_region
              loop: start=0, step=1, limit=1
              $region56: #{joints_mse_loss_distillation.1} parent=54 // loop_pre_header
                _
              $region57: #{joints_mse_loss_distillation.1} parent=54 // loop_header
                %s245 = sphi 0, %s249
                %p246 = scmp.ge.s32.totalorder %s245, 1
                %s250 = sphi %s239, %s239
                %s251 = sphi %s236, %s236
              $region58: #{joints_mse_loss_distillation.1} parent=54 // loop_header_branch
                %248 = sbr.rel (%p246) target = $region62
              $region59: #{joints_mse_loss_distillation.1} parent=54 // loop_body
                %v252 = vld [vmem:[%s250] sm:$0xff]
                %253 = vst [vmem:[%s251] sm:$0xff] %v252
                %v254 = vld [vmem:[%s250 + $0x8] sm:$0xff]
                %255 = vst [vmem:[%s251 + $0x8] sm:$0xff] %v254
                %v256 = vld [vmem:[%s250 + $0x40] sm:$0xff]
                %257 = vst [vmem:[%s251 + $0x10] sm:$0xff] %v256
                %v258 = vld [vmem:[%s250 + $0x48] sm:$0xff]
                %259 = vst [vmem:[%s251 + $0x18] sm:$0xff] %v258
                %v260 = vld [vmem:[%s250 + $0x80] sm:$0xff]
                %261 = vst [vmem:[%s251 + $0x20] sm:$0xff] %v260
                %v262 = vld [vmem:[%s250 + $0x88] sm:$0xff]
                %263 = vst [vmem:[%s251 + $0x28] sm:$0xff] %v262
                %v264 = vld [vmem:[%s250 + $0xc0] sm:$0xff]
                %265 = vst [vmem:[%s251 + $0x30] sm:$0xff] %v264
                %v266 = vld [vmem:[%s250 + $0xc8] sm:$0xff]
                %267 = vst [vmem:[%s251 + $0x38] sm:$0xff] %v266
              $region60: #{joints_mse_loss_distillation.1} parent=54 // loop_footer
                %s249 = sadd.s32 1, %s245
              $region61: #{joints_mse_loss_distillation.1} parent=54 // loop_footer_branch
                %244 = sbr.rel target = $region57
              $region62: #{joints_mse_loss_distillation.1} parent=54 // loop_exit
                _
            $region55: #{joints_mse_loss_distillation.1} parent=50 // pred_fallthru
              _
            // Predicated region
            $region63: #{joints_mse_loss_distillation.1} parent=50 // pred_check
              _
            $region64: #{joints_mse_loss_distillation.1} parent=50 // pred_check_branch
              %269 = sbr.rel target = $region66
            $region65: #{joints_mse_loss_distillation.1} parent=50 // pred_region
              _
            $region66: #{joints_mse_loss_distillation.1} parent=50 // pred_fallthru
              _
          $region51: #{joints_mse_loss_distillation.1} parent=46 // pred_fallthru
            _
          %270 = vnop
        $region47: #{joints_mse_loss_distillation.1} parent=19 // pred_fallthru
          _
        // Predicated region
        $region67: #{joints_mse_loss_distillation.1} parent=19 // pred_check
          %p271 = pneg %p82
        $region68: #{joints_mse_loss_distillation.1} parent=19 // pred_check_branch
          %273 = sbr.rel (%p271) target = $region70
        $region69: #{joints_mse_loss_distillation.1} parent=19 // pred_region
          %s274 = sand.u32 %s72, 1
          %s275 = sand.u32 %s72, 1
          %s276 = smul.addr %s275, 64
          %s277 = scalar_lea.vmem [#allocation7], %s276
          %s278 = smul.u32 2, %s10
          %s279 = smul.addr %s278, 8
          %s280 = scalar_lea.vmem %s2, %s279
          // Predicated region
          $region71: #{joints_mse_loss_distillation.1} parent=69 // pred_check
            _
          $region72: #{joints_mse_loss_distillation.1} parent=69 // pred_check_branch
            %282 = sbr.rel (0) target = $region74
          $region73: #{joints_mse_loss_distillation.1} parent=69 // pred_region
            // Predicated region
            $region75: #{joints_mse_loss_distillation.1} parent=73 // pred_check
              _
            $region76: #{joints_mse_loss_distillation.1} parent=73 // pred_check_branch
              %284 = sbr.rel (0) target = $region78
            $region77: #{joints_mse_loss_distillation.1} parent=73 // pred_region
              loop: start=0, step=1, limit=1
              $region79: #{joints_mse_loss_distillation.1} parent=77 // loop_pre_header
                _
              $region80: #{joints_mse_loss_distillation.1} parent=77 // loop_header
                %s286 = sphi 0, %s290
                %p287 = scmp.ge.s32.totalorder %s286, 1
                %s291 = sphi %s280, %s280
                %s292 = sphi %s277, %s277
              $region81: #{joints_mse_loss_distillation.1} parent=77 // loop_header_branch
                %289 = sbr.rel (%p287) target = $region85
              $region82: #{joints_mse_loss_distillation.1} parent=77 // loop_body
                %v293 = vld [vmem:[%s291] sm:$0xff]
                %294 = vst [vmem:[%s292] sm:$0xff] %v293
                %v295 = vld [vmem:[%s291 + $0x8] sm:$0xff]
                %296 = vst [vmem:[%s292 + $0x8] sm:$0xff] %v295
                %v297 = vld [vmem:[%s291 + $0x40] sm:$0xff]
                %298 = vst [vmem:[%s292 + $0x10] sm:$0xff] %v297
                %v299 = vld [vmem:[%s291 + $0x48] sm:$0xff]
                %300 = vst [vmem:[%s292 + $0x18] sm:$0xff] %v299
                %v301 = vld [vmem:[%s291 + $0x80] sm:$0xff]
                %302 = vst [vmem:[%s292 + $0x20] sm:$0xff] %v301
                %v303 = vld [vmem:[%s291 + $0x88] sm:$0xff]
                %304 = vst [vmem:[%s292 + $0x28] sm:$0xff] %v303
                %v305 = vld [vmem:[%s291 + $0xc0] sm:$0xff]
                %306 = vst [vmem:[%s292 + $0x30] sm:$0xff] %v305
                %v307 = vld [vmem:[%s291 + $0xc8] sm:$0xff]
                %308 = vst [vmem:[%s292 + $0x38] sm:$0xff] %v307
              $region83: #{joints_mse_loss_distillation.1} parent=77 // loop_footer
                %s290 = sadd.s32 1, %s286
              $region84: #{joints_mse_loss_distillation.1} parent=77 // loop_footer_branch
                %285 = sbr.rel target = $region80
              $region85: #{joints_mse_loss_distillation.1} parent=77 // loop_exit
                _
            $region78: #{joints_mse_loss_distillation.1} parent=73 // pred_fallthru
              _
            // Predicated region
            $region86: #{joints_mse_loss_distillation.1} parent=73 // pred_check
              _
            $region87: #{joints_mse_loss_distillation.1} parent=73 // pred_check_branch
              %310 = sbr.rel target = $region89
            $region88: #{joints_mse_loss_distillation.1} parent=73 // pred_region
              _
            $region89: #{joints_mse_loss_distillation.1} parent=73 // pred_fallthru
              _
          $region74: #{joints_mse_loss_distillation.1} parent=69 // pred_fallthru
            _
          %311 = vnop
        $region70: #{joints_mse_loss_distillation.1} parent=19 // pred_fallthru
          _
      $region20: #{joints_mse_loss_distillation.1} parent=5 // pred_fallthru
        _
      %p312 = scmp.le.s32.totalorder 1, %s10
      %p313 = scmp.lt.s32.totalorder %s10, 5
      %p314 = pnand %p312, %p313
      %p315 = pneg %p314
      // Predicated region
      $region90: #{joints_mse_loss_distillation.1} parent=5 // pred_check
        _
      $region91: #{joints_mse_loss_distillation.1} parent=5 // pred_check_branch
        %317 = sbr.rel (%p314) target = $region93
      $region92: #{joints_mse_loss_distillation.1} parent=5 // pred_region
        %s318 = ssub.s32 %s10, 1
        %s319 = sand.u32 %s23, 1
        %s320 = sand.u32 %s23, 1
        %s321 = smul.addr %s320, 192
        %s322 = scalar_lea.vmem [#allocation5], %s321
        // Predicated region
        $region94: #{joints_mse_loss_distillation.1} parent=92 // pred_check
          %p323 = pneg %p36
        $region95: #{joints_mse_loss_distillation.1} parent=92 // pred_check_branch
          %325 = sbr.rel (%p323) target = $region97
        $region96: #{joints_mse_loss_distillation.1} parent=92 // pred_region
          _
        $region97: #{joints_mse_loss_distillation.1} parent=92 // pred_fallthru
          _
        %s326 = sand.u32 %s49, 1
        %s327 = sand.u32 %s49, 1
        %s328 = smul.addr %s327, 64
        %s329 = scalar_lea.vmem [#allocation6], %s328
        // Predicated region
        $region98: #{joints_mse_loss_distillation.1} parent=92 // pred_check
          %p330 = pneg %p62
        $region99: #{joints_mse_loss_distillation.1} parent=92 // pred_check_branch
          %332 = sbr.rel (%p330) target = $region101
        $region100: #{joints_mse_loss_distillation.1} parent=92 // pred_region
          _
        $region101: #{joints_mse_loss_distillation.1} parent=92 // pred_fallthru
          _
        %s333 = sand.u32 %s75, 1
        %s334 = sand.u32 %s75, 1
        %s335 = smul.addr %s334, 64
        %s336 = scalar_lea.vmem [#allocation7], %s335
        // Predicated region
        $region102: #{joints_mse_loss_distillation.1} parent=92 // pred_check
          %p337 = pneg %p88
        $region103: #{joints_mse_loss_distillation.1} parent=92 // pred_check_branch
          %339 = sbr.rel (%p337) target = $region105
        $region104: #{joints_mse_loss_distillation.1} parent=92 // pred_region
          _
        $region105: #{joints_mse_loss_distillation.1} parent=92 // pred_fallthru
          _
        %s340 = sand.u32 %s23, 1
        %s341 = sand.u32 %s23, 1
        %s342 = smul.addr %s341, 192
        %s343 = scalar_lea.vmem [#allocation5], %s342
        %p344 = pneg %p36
        %p345 = pneg %p33
        %s346 = sand.u32 %s49, 1
        %s347 = sand.u32 %s49, 1
        %s348 = smul.addr %s347, 64
        %s349 = scalar_lea.vmem [#allocation6], %s348
        %p350 = pneg %p62
        %p351 = pneg %p59
        %s352 = sand.u32 %s75, 1
        %s353 = sand.u32 %s75, 1
        %s354 = smul.addr %s353, 64
        %s355 = scalar_lea.vmem [#allocation7], %s354
        %p356 = pneg %p88
        %p357 = pneg %p85
        %p358 = pneg %p109
        %p359 = pneg %p106
        %p360 = pneg %p135
        %p361 = pneg %p132
        %p362 = scmp.lt.s32.totalorder %s15, 3
        %s363 = scalar_select %p362, %s15, 3
        %s364 = scalar_lea.vmem %s4, %s363
        %s365 = smul.u32 2, %s15
        %s366 = smul.u32 2, %s15
        %s367 = smul.u32 2, %s15
        %p368 = scmp.lt.s32.totalorder %s15, 3
        %s369 = scalar_select %p368, %s15, 3
        %s370 = scalar_lea.vmem %s4, %s369
        %v371 = vld [vmem:[%s3] sm:$0xff]
        %v372 = vld [vmem:[%s3 + $0x8] sm:$0xff]
        %v373 = vld [vmem:[%s3 + $0x10] sm:$0xff]
        %v374 = vld [vmem:[%s3 + $0x18] sm:$0xff]
        %s375 = scalar_lea.vmem %s322, 128 [#allocation5]
        %v376 = vld [vmem:[%s375] sm:$0xff]
        %v377 = vld [vmem:[%s375 + $0x8] sm:$0xff]
        %v378 = vld [vmem:[%s375 + $0x10] sm:$0xff]
        %v379 = vld [vmem:[%s375 + $0x18] sm:$0xff]
        %v380 = vmax.f32 %v376, %v378
        %v381 = vmax.f32 %v377, %v379
        %v382 = vld [vmem:[%s375 + $0x20] sm:$0xff]
        %v383 = vld [vmem:[%s375 + $0x28] sm:$0xff]
        %v384 = vmax.f32 %v380, %v382
        %v385 = vmax.f32 %v381, %v383
        %v386 = vld [vmem:[%s375 + $0x30] sm:$0xff]
        %v387 = vld [vmem:[%s375 + $0x38] sm:$0xff]
        %v388 = vmax.f32 %v384, %v386
        %v389 = vmax.f32 %v385, %v387
        %v390 = vld [vmem:[%s329] sm:$0xff]
        %v391 = vld [vmem:[%s329 + $0x8] sm:$0xff]
        %v392 = vsub.f32 %v376, %v390
        %v393 = vsub.f32 %v377, %v391
        %v394 = vld [vmem:[%s336] sm:$0xff]
        %v395 = vld [vmem:[%s336 + $0x8] sm:$0xff]
        %v396 = vsub.f32 %v376, %v394
        %v397 = vsub.f32 %v377, %v395
        %v398 = vmul.f32 %v392, %v392
        %v399 = vmul.f32 %v393, %v393
        %v400 = vmul.f32 %v398, 0.5
        %v401 = vmul.f32 %v399, 0.5
        %v402 = vmul.f32 %v396, %v396
        %v403 = vmul.f32 %v397, %v397
        %405 = vset.pattern.permute.xlu0 0
        %406 = vperm.xlu0 %405, %v371
        %v407 = vpop.permute.xlu0 %406
        %v409 = vmul.f32 %v407, %v402
        %v410 = vmul.f32 %v407, %v403
        %v411 = vadd.f32 %v400, %v409
        %v412 = vadd.f32 %v401, %v410
        %413 = vst [vmem:[#allocation2] sm:$0xff] %v411
        %414 = vst [vmem:[#allocation2 + $0x8] sm:$0xff] %v412
        %v415 = vsub.f32 %v376, %v388
        %v416 = vsub.f32 %v377, %v389
        %v417 = vmul.f32 %v415, 1.442695
        %v418 = vpow.pop %v417
        %v419 = vmul.f32 %v416, 1.442695
        %v420 = vpow.pop %v419
        %421 = vst [vmem:[#allocation4] sm:$0xff] %v418
        %422 = vst [vmem:[#allocation4 + $0x8] sm:$0xff] %v420
        %v423 = vld [vmem:[%s375 + $0x10] sm:$0xff]
        %v424 = vld [vmem:[%s375 + $0x18] sm:$0xff]
        %v425 = vld [vmem:[%s329 + $0x10] sm:$0xff]
        %v426 = vld [vmem:[%s329 + $0x18] sm:$0xff]
        %v427 = vsub.f32 %v423, %v425
        %v428 = vsub.f32 %v424, %v426
        %v429 = vld [vmem:[%s336 + $0x10] sm:$0xff]
        %v430 = vld [vmem:[%s336 + $0x18] sm:$0xff]
        %v431 = vsub.f32 %v423, %v429
        %v432 = vsub.f32 %v424, %v430
        %v433 = vmul.f32 %v427, %v427
        %v434 = vmul.f32 %v428, %v428
        %v435 = vmul.f32 %v433, 0.5
        %v436 = vmul.f32 %v434, 0.5
        %v437 = vmul.f32 %v431, %v431
        %v438 = vmul.f32 %v432, %v432
        %440 = vset.pattern.permute.xlu0 0
        %441 = vperm.xlu0 %440, %v372
        %v442 = vpop.permute.xlu0 %441
        %v444 = vmul.f32 %v442, %v437
        %v445 = vmul.f32 %v442, %v438
        %v446 = vadd.f32 %v435, %v444
        %v447 = vadd.f32 %v436, %v445
        %448 = vst [vmem:[#allocation2 + $0x10] sm:$0xff] %v446
        %449 = vst [vmem:[#allocation2 + $0x18] sm:$0xff] %v447
        %v450 = vsub.f32 %v423, %v388
        %v451 = vsub.f32 %v424, %v389
        %v452 = vmul.f32 %v450, 1.442695
        %v453 = vpow.pop %v452
        %v454 = vmul.f32 %v451, 1.442695
        %v455 = vpow.pop %v454
        %456 = vst [vmem:[#allocation4 + $0x10] sm:$0xff] %v453
        %457 = vst [vmem:[#allocation4 + $0x18] sm:$0xff] %v455
        %v458 = vadd.f32 %v418, %v453
        %v459 = vadd.f32 %v420, %v455
        %v460 = vld [vmem:[%s375 + $0x20] sm:$0xff]
        %v461 = vld [vmem:[%s375 + $0x28] sm:$0xff]
        %v462 = vld [vmem:[%s329 + $0x20] sm:$0xff]
        %v463 = vld [vmem:[%s329 + $0x28] sm:$0xff]
        %v464 = vsub.f32 %v460, %v462
        %v465 = vsub.f32 %v461, %v463
        %v466 = vld [vmem:[%s336 + $0x20] sm:$0xff]
        %v467 = vld [vmem:[%s336 + $0x28] sm:$0xff]
        %v468 = vsub.f32 %v460, %v466
        %v469 = vsub.f32 %v461, %v467
        %v470 = vmul.f32 %v464, %v464
        %v471 = vmul.f32 %v465, %v465
        %v472 = vmul.f32 %v470, 0.5
        %v473 = vmul.f32 %v471, 0.5
        %v474 = vmul.f32 %v468, %v468
        %v475 = vmul.f32 %v469, %v469
        %477 = vset.pattern.permute.xlu0 0
        %478 = vperm.xlu0 %477, %v373
        %v479 = vpop.permute.xlu0 %478
        %v481 = vmul.f32 %v479, %v474
        %v482 = vmul.f32 %v479, %v475
        %v483 = vadd.f32 %v472, %v481
        %v484 = vadd.f32 %v473, %v482
        %485 = vst [vmem:[#allocation2 + $0x20] sm:$0xff] %v483
        %486 = vst [vmem:[#allocation2 + $0x28] sm:$0xff] %v484
        %v487 = vsub.f32 %v460, %v388
        %v488 = vsub.f32 %v461, %v389
        %v489 = vmul.f32 %v487, 1.442695
        %v490 = vpow.pop %v489
        %v491 = vmul.f32 %v488, 1.442695
        %v492 = vpow.pop %v491
        %493 = vst [vmem:[#allocation4 + $0x20] sm:$0xff] %v490
        %494 = vst [vmem:[#allocation4 + $0x28] sm:$0xff] %v492
        %v495 = vadd.f32 %v458, %v490
        %v496 = vadd.f32 %v459, %v492
        %v497 = vld [vmem:[%s375 + $0x30] sm:$0xff]
        %v498 = vld [vmem:[%s375 + $0x38] sm:$0xff]
        %v499 = vld [vmem:[%s329 + $0x30] sm:$0xff]
        %v500 = vld [vmem:[%s329 + $0x38] sm:$0xff]
        %v501 = vsub.f32 %v497, %v499
        %v502 = vsub.f32 %v498, %v500
        %v503 = vld [vmem:[%s336 + $0x30] sm:$0xff]
        %v504 = vld [vmem:[%s336 + $0x38] sm:$0xff]
        %v505 = vsub.f32 %v497, %v503
        %v506 = vsub.f32 %v498, %v504
        %v507 = vmul.f32 %v501, %v501
        %v508 = vmul.f32 %v502, %v502
        %v509 = vmul.f32 %v507, 0.5
        %v510 = vmul.f32 %v508, 0.5
        %v511 = vmul.f32 %v505, %v505
        %v512 = vmul.f32 %v506, %v506
        %514 = vset.pattern.permute.xlu0 0
        %515 = vperm.xlu0 %514, %v374
        %v516 = vpop.permute.xlu0 %515
        %v518 = vmul.f32 %v516, %v511
        %v519 = vmul.f32 %v516, %v512
        %v520 = vadd.f32 %v509, %v518
        %v521 = vadd.f32 %v510, %v519
        %522 = vst [vmem:[#allocation2 + $0x30] sm:$0xff] %v520
        %523 = vst [vmem:[#allocation2 + $0x38] sm:$0xff] %v521
        %v524 = vsub.f32 %v497, %v388
        %v525 = vsub.f32 %v498, %v389
        %v526 = vmul.f32 %v524, 1.442695
        %v527 = vpow.pop %v526
        %v528 = vmul.f32 %v525, 1.442695
        %v529 = vpow.pop %v528
        %530 = vst [vmem:[#allocation4 + $0x30] sm:$0xff] %v527
        %531 = vst [vmem:[#allocation4 + $0x38] sm:$0xff] %v529
        %v532 = vadd.f32 %v495, %v527
        %v533 = vadd.f32 %v496, %v529
        %v534 = vrcp.pop %v532
        %v535 = vmul.f32 %v532, %v534
        %v536 = vsub.f32 1.0, %v535
        %v537 = vmul.f32 %v534, %v536
        %v538 = vadd.f32 %v534, %v537
        %vm539 = vweird.f32 %v532
        %vm540 = vweird.f32 %v534
        %vm541 = vmor %vm539, %vm540
        %v542 = vsel %vm541, %v534, %v538
        %v543 = vand.u32 2147483647, %v532
        %vm544 = vcmp.eq.f32.partialorder %v543, 8.507059e+37
        %v545 = vand.u32 %v532, 2147483648
        %v546 = vor.u32 1.1754944e-38, %v545
        %v547 = vsel %vm544, %v546, %v542
        %v548 = vrcp.pop %v533
        %v549 = vmul.f32 %v533, %v548
        %v550 = vsub.f32 1.0, %v549
        %v551 = vmul.f32 %v548, %v550
        %v552 = vadd.f32 %v548, %v551
        %vm553 = vweird.f32 %v533
        %vm554 = vweird.f32 %v548
        %vm555 = vmor %vm553, %vm554
        %v556 = vsel %vm555, %v548, %v552
        %v557 = vand.u32 2147483647, %v533
        %vm558 = vcmp.eq.f32.partialorder %v557, 8.507059e+37
        %v559 = vand.u32 %v533, 2147483648
        %v560 = vor.u32 1.1754944e-38, %v559
        %v561 = vsel %vm558, %v560, %v556
        %v562 = vld [vmem:[#allocation4] sm:$0xff]
        %v563 = vld [vmem:[#allocation4 + $0x8] sm:$0xff]
        %v564 = vmul.f32 %v562, %v547
        %v565 = vmul.f32 %v563, %v561
        %566 = vst [vmem:[#allocation3] sm:$0xff] %v564
        %567 = vst [vmem:[#allocation3 + $0x8] sm:$0xff] %v565
        %v568 = vld [vmem:[#allocation4 + $0x10] sm:$0xff]
        %v569 = vld [vmem:[#allocation4 + $0x18] sm:$0xff]
        %v570 = vmul.f32 %v568, %v547
        %v571 = vmul.f32 %v569, %v561
        %572 = vst [vmem:[#allocation3 + $0x10] sm:$0xff] %v570
        %573 = vst [vmem:[#allocation3 + $0x18] sm:$0xff] %v571
        %v574 = vld [vmem:[#allocation4 + $0x20] sm:$0xff]
        %v575 = vld [vmem:[#allocation4 + $0x28] sm:$0xff]
        %v576 = vmul.f32 %v574, %v547
        %v577 = vmul.f32 %v575, %v561
        %578 = vst [vmem:[#allocation3 + $0x20] sm:$0xff] %v576
        %579 = vst [vmem:[#allocation3 + $0x28] sm:$0xff] %v577
        %v580 = vld [vmem:[#allocation4 + $0x30] sm:$0xff]
        %v581 = vld [vmem:[#allocation4 + $0x38] sm:$0xff]
        %v582 = vmul.f32 %v580, %v547
        %v583 = vmul.f32 %v581, %v561
        %584 = vst [vmem:[#allocation3 + $0x30] sm:$0xff] %v582
        %585 = vst [vmem:[#allocation3 + $0x38] sm:$0xff] %v583
        %s586 = scalar_lea.vmem %s322, 64 [#allocation5]
        %v587 = vld [vmem:[%s586] sm:$0xff]
        %v588 = vld [vmem:[%s586 + $0x8] sm:$0xff]
        %v589 = vld [vmem:[%s586 + $0x10] sm:$0xff]
        %v590 = vld [vmem:[%s586 + $0x18] sm:$0xff]
        %v591 = vmax.f32 %v587, %v589
        %v592 = vmax.f32 %v588, %v590
        %v593 = vld [vmem:[%s586 + $0x20] sm:$0xff]
        %v594 = vld [vmem:[%s586 + $0x28] sm:$0xff]
        %v595 = vmax.f32 %v591, %v593
        %v596 = vmax.f32 %v592, %v594
        %v597 = vld [vmem:[%s586 + $0x30] sm:$0xff]
        %v598 = vld [vmem:[%s586 + $0x38] sm:$0xff]
        %v599 = vmax.f32 %v595, %v597
        %v600 = vmax.f32 %v596, %v598
        %v601 = vld [vmem:[%s329] sm:$0xff]
        %v602 = vld [vmem:[%s329 + $0x8] sm:$0xff]
        %v603 = vsub.f32 %v587, %v601
        %v604 = vsub.f32 %v588, %v602
        %v605 = vld [vmem:[#allocation3] sm:$0xff]
        %v606 = vld [vmem:[#allocation3 + $0x8] sm:$0xff]
        %v607 = vmul.f32 %v605, 0.3
        %v608 = vmul.f32 %v606, 0.3
        %v609 = vld [vmem:[%s336] sm:$0xff]
        %v610 = vld [vmem:[%s336 + $0x8] sm:$0xff]
        %v611 = vmul.f32 %v609, 0.7
        %v612 = vmul.f32 %v610, 0.7
        %v613 = vadd.f32 %v607, %v611
        %v614 = vadd.f32 %v608, %v612
        %v615 = vsub.f32 %v587, %v613
        %v616 = vsub.f32 %v588, %v614
        %v617 = vmul.f32 %v603, %v603
        %v618 = vmul.f32 %v604, %v604
        %v619 = vmul.f32 %v617, 0.5
        %v620 = vmul.f32 %v618, 0.5
        %v621 = vmul.f32 %v615, %v615
        %v622 = vmul.f32 %v616, %v616
        %v623 = vmul.f32 %v407, %v621
        %v624 = vmul.f32 %v407, %v622
        %v625 = vadd.f32 %v619, %v623
        %v626 = vadd.f32 %v620, %v624
        %v627 = vld [vmem:[#allocation2] sm:$0xff]
        %v628 = vld [vmem:[#allocation2 + $0x8] sm:$0xff]
        %v629 = vadd.f32 %v627, %v625
        %v630 = vadd.f32 %v628, %v626
        %631 = vst [vmem:[#allocation2] sm:$0xff] %v629
        %632 = vst [vmem:[#allocation2 + $0x8] sm:$0xff] %v630
        %v633 = vsub.f32 %v587, %v599
        %v634 = vsub.f32 %v588, %v600
        %v635 = vmul.f32 %v633, 1.442695
        %v636 = vpow.pop %v635
        %v637 = vmul.f32 %v634, 1.442695
        %v638 = vpow.pop %v637
        %639 = vst [vmem:[#allocation4] sm:$0xff] %v636
        %640 = vst [vmem:[#allocation4 + $0x8] sm:$0xff] %v638
        %v641 = vld [vmem:[%s586 + $0x10] sm:$0xff]
        %v642 = vld [vmem:[%s586 + $0x18] sm:$0xff]
        %v643 = vld [vmem:[%s329 + $0x10] sm:$0xff]
        %v644 = vld [vmem:[%s329 + $0x18] sm:$0xff]
        %v645 = vsub.f32 %v641, %v643
        %v646 = vsub.f32 %v642, %v644
        %v647 = vld [vmem:[#allocation3 + $0x10] sm:$0xff]
        %v648 = vld [vmem:[#allocation3 + $0x18] sm:$0xff]
        %v649 = vmul.f32 %v647, 0.3
        %v650 = vmul.f32 %v648, 0.3
        %v651 = vld [vmem:[%s336 + $0x10] sm:$0xff]
        %v652 = vld [vmem:[%s336 + $0x18] sm:$0xff]
        %v653 = vmul.f32 %v651, 0.7
        %v654 = vmul.f32 %v652, 0.7
        %v655 = vadd.f32 %v649, %v653
        %v656 = vadd.f32 %v650, %v654
        %v657 = vsub.f32 %v641, %v655
        %v658 = vsub.f32 %v642, %v656
        %v659 = vmul.f32 %v645, %v645
        %v660 = vmul.f32 %v646, %v646
        %v661 = vmul.f32 %v659, 0.5
        %v662 = vmul.f32 %v660, 0.5
        %v663 = vmul.f32 %v657, %v657
        %v664 = vmul.f32 %v658, %v658
        %v665 = vmul.f32 %v442, %v663
        %v666 = vmul.f32 %v442, %v664
        %v667 = vadd.f32 %v661, %v665
        %v668 = vadd.f32 %v662, %v666
        %v669 = vld [vmem:[#allocation2 + $0x10] sm:$0xff]
        %v670 = vld [vmem:[#allocation2 + $0x18] sm:$0xff]
        %v671 = vadd.f32 %v669, %v667
        %v672 = vadd.f32 %v670, %v668
        %673 = vst [vmem:[#allocation2 + $0x10] sm:$0xff] %v671
        %674 = vst [vmem:[#allocation2 + $0x18] sm:$0xff] %v672
        %v675 = vsub.f32 %v641, %v599
        %v676 = vsub.f32 %v642, %v600
        %v677 = vmul.f32 %v675, 1.442695
        %v678 = vpow.pop %v677
        %v679 = vmul.f32 %v676, 1.442695
        %v680 = vpow.pop %v679
        %681 = vst [vmem:[#allocation4 + $0x10] sm:$0xff] %v678
        %682 = vst [vmem:[#allocation4 + $0x18] sm:$0xff] %v680
        %v683 = vadd.f32 %v636, %v678
        %v684 = vadd.f32 %v638, %v680
        %v685 = vld [vmem:[%s586 + $0x20] sm:$0xff]
        %v686 = vld [vmem:[%s586 + $0x28] sm:$0xff]
        %v687 = vld [vmem:[%s329 + $0x20] sm:$0xff]
        %v688 = vld [vmem:[%s329 + $0x28] sm:$0xff]
        %v689 = vsub.f32 %v685, %v687
        %v690 = vsub.f32 %v686, %v688
        %v691 = vld [vmem:[#allocation3 + $0x20] sm:$0xff]
        %v692 = vld [vmem:[#allocation3 + $0x28] sm:$0xff]
        %v693 = vmul.f32 %v691, 0.3
        %v694 = vmul.f32 %v692, 0.3
        %v695 = vld [vmem:[%s336 + $0x20] sm:$0xff]
        %v696 = vld [vmem:[%s336 + $0x28] sm:$0xff]
        %v697 = vmul.f32 %v695, 0.7
        %v698 = vmul.f32 %v696, 0.7
        %v699 = vadd.f32 %v693, %v697
        %v700 = vadd.f32 %v694, %v698
        %v701 = vsub.f32 %v685, %v699
        %v702 = vsub.f32 %v686, %v700
        %v703 = vmul.f32 %v689, %v689
        %v704 = vmul.f32 %v690, %v690
        %v705 = vmul.f32 %v703, 0.5
        %v706 = vmul.f32 %v704, 0.5
        %v707 = vmul.f32 %v701, %v701
        %v708 = vmul.f32 %v702, %v702
        %v709 = vmul.f32 %v479, %v707
        %v710 = vmul.f32 %v479, %v708
        %v711 = vadd.f32 %v705, %v709
        %v712 = vadd.f32 %v706, %v710
        %v713 = vld [vmem:[#allocation2 + $0x20] sm:$0xff]
        %v714 = vld [vmem:[#allocation2 + $0x28] sm:$0xff]
        %v715 = vadd.f32 %v713, %v711
        %v716 = vadd.f32 %v714, %v712
        %717 = vst [vmem:[#allocation2 + $0x20] sm:$0xff] %v715
        %718 = vst [vmem:[#allocation2 + $0x28] sm:$0xff] %v716
        %v719 = vsub.f32 %v685, %v599
        %v720 = vsub.f32 %v686, %v600
        %v721 = vmul.f32 %v719, 1.442695
        %v722 = vpow.pop %v721
        %v723 = vmul.f32 %v720, 1.442695
        %v724 = vpow.pop %v723
        %725 = vst [vmem:[#allocation4 + $0x20] sm:$0xff] %v722
        %726 = vst [vmem:[#allocation4 + $0x28] sm:$0xff] %v724
        %v727 = vadd.f32 %v683, %v722
        %v728 = vadd.f32 %v684, %v724
        %v729 = vld [vmem:[%s586 + $0x30] sm:$0xff]
        %v730 = vld [vmem:[%s586 + $0x38] sm:$0xff]
        %v731 = vld [vmem:[%s329 + $0x30] sm:$0xff]
        %v732 = vld [vmem:[%s329 + $0x38] sm:$0xff]
        %v733 = vsub.f32 %v729, %v731
        %v734 = vsub.f32 %v730, %v732
        %v735 = vld [vmem:[#allocation3 + $0x30] sm:$0xff]
        %v736 = vld [vmem:[#allocation3 + $0x38] sm:$0xff]
        %v737 = vmul.f32 %v735, 0.3
        %v738 = vmul.f32 %v736, 0.3
        %v739 = vld [vmem:[%s336 + $0x30] sm:$0xff]
        %v740 = vld [vmem:[%s336 + $0x38] sm:$0xff]
        %v741 = vmul.f32 %v739, 0.7
        %v742 = vmul.f32 %v740, 0.7
        %v743 = vadd.f32 %v737, %v741
        %v744 = vadd.f32 %v738, %v742
        %v745 = vsub.f32 %v729, %v743
        %v746 = vsub.f32 %v730, %v744
        %v747 = vmul.f32 %v733, %v733
        %v748 = vmul.f32 %v734, %v734
        %v749 = vmul.f32 %v747, 0.5
        %v750 = vmul.f32 %v748, 0.5
        %v751 = vmul.f32 %v745, %v745
        %v752 = vmul.f32 %v746, %v746
        %v753 = vmul.f32 %v516, %v751
        %v754 = vmul.f32 %v516, %v752
        %v755 = vadd.f32 %v749, %v753
        %v756 = vadd.f32 %v750, %v754
        %v757 = vld [vmem:[#allocation2 + $0x30] sm:$0xff]
        %v758 = vld [vmem:[#allocation2 + $0x38] sm:$0xff]
        %v759 = vadd.f32 %v757, %v755
        %v760 = vadd.f32 %v758, %v756
        %761 = vst [vmem:[#allocation2 + $0x30] sm:$0xff] %v759
        %762 = vst [vmem:[#allocation2 + $0x38] sm:$0xff] %v760
        %v763 = vsub.f32 %v729, %v599
        %v764 = vsub.f32 %v730, %v600
        %v765 = vmul.f32 %v763, 1.442695
        %v766 = vpow.pop %v765
        %v767 = vmul.f32 %v764, 1.442695
        %v768 = vpow.pop %v767
        %769 = vst [vmem:[#allocation4 + $0x30] sm:$0xff] %v766
        %770 = vst [vmem:[#allocation4 + $0x38] sm:$0xff] %v768
        %v771 = vadd.f32 %v727, %v766
        %v772 = vadd.f32 %v728, %v768
        %v773 = vrcp.pop %v771
        %v774 = vmul.f32 %v771, %v773
        %v775 = vsub.f32 1.0, %v774
        %v776 = vmul.f32 %v773, %v775
        %v777 = vadd.f32 %v773, %v776
        %vm778 = vweird.f32 %v771
        %vm779 = vweird.f32 %v773
        %vm780 = vmor %vm778, %vm779
        %v781 = vsel %vm780, %v773, %v777
        %v782 = vand.u32 2147483647, %v771
        %vm783 = vcmp.eq.f32.partialorder %v782, 8.507059e+37
        %v784 = vand.u32 %v771, 2147483648
        %v785 = vor.u32 1.1754944e-38, %v784
        %v786 = vsel %vm783, %v785, %v781
        %v787 = vrcp.pop %v772
        %v788 = vmul.f32 %v772, %v787
        %v789 = vsub.f32 1.0, %v788
        %v790 = vmul.f32 %v787, %v789
        %v791 = vadd.f32 %v787, %v790
        %vm792 = vweird.f32 %v772
        %vm793 = vweird.f32 %v787
        %vm794 = vmor %vm792, %vm793
        %v795 = vsel %vm794, %v787, %v791
        %v796 = vand.u32 2147483647, %v772
        %vm797 = vcmp.eq.f32.partialorder %v796, 8.507059e+37
        %v798 = vand.u32 %v772, 2147483648
        %v799 = vor.u32 1.1754944e-38, %v798
        %v800 = vsel %vm797, %v799, %v795
        %v801 = vld [vmem:[#allocation4] sm:$0xff]
        %v802 = vld [vmem:[#allocation4 + $0x8] sm:$0xff]
        %v803 = vmul.f32 %v801, %v786
        %v804 = vmul.f32 %v802, %v800
        %v805 = vld [vmem:[#allocation3] sm:$0xff]
        %v806 = vld [vmem:[#allocation3 + $0x8] sm:$0xff]
        %v807 = vmul.f32 %v805, 0.7
        %v808 = vmul.f32 %v806, 0.7
        %v809 = vadd.f32 %v803, %v807
        %v810 = vadd.f32 %v804, %v808
        %811 = vst [vmem:[#allocation3] sm:$0xff] %v809
        %812 = vst [vmem:[#allocation3 + $0x8] sm:$0xff] %v810
        %v813 = vld [vmem:[#allocation4 + $0x10] sm:$0xff]
        %v814 = vld [vmem:[#allocation4 + $0x18] sm:$0xff]
        %v815 = vmul.f32 %v813, %v786
        %v816 = vmul.f32 %v814, %v800
        %v817 = vld [vmem:[#allocation3 + $0x10] sm:$0xff]
        %v818 = vld [vmem:[#allocation3 + $0x18] sm:$0xff]
        %v819 = vmul.f32 %v817, 0.7
        %v820 = vmul.f32 %v818, 0.7
        %v821 = vadd.f32 %v815, %v819
        %v822 = vadd.f32 %v816, %v820
        %823 = vst [vmem:[#allocation3 + $0x10] sm:$0xff] %v821
        %824 = vst [vmem:[#allocation3 + $0x18] sm:$0xff] %v822
        %v825 = vld [vmem:[#allocation4 + $0x20] sm:$0xff]
        %v826 = vld [vmem:[#allocation4 + $0x28] sm:$0xff]
        %v827 = vmul.f32 %v825, %v786
        %v828 = vmul.f32 %v826, %v800
        %v829 = vld [vmem:[#allocation3 + $0x20] sm:$0xff]
        %v830 = vld [vmem:[#allocation3 + $0x28] sm:$0xff]
        %v831 = vmul.f32 %v829, 0.7
        %v832 = vmul.f32 %v830, 0.7
        %v833 = vadd.f32 %v827, %v831
        %v834 = vadd.f32 %v828, %v832
        %835 = vst [vmem:[#allocation3 + $0x20] sm:$0xff] %v833
        %836 = vst [vmem:[#allocation3 + $0x28] sm:$0xff] %v834
        %v837 = vld [vmem:[#allocation4 + $0x30] sm:$0xff]
        %v838 = vld [vmem:[#allocation4 + $0x38] sm:$0xff]
        %v839 = vmul.f32 %v837, %v786
        %v840 = vmul.f32 %v838, %v800
        %v841 = vld [vmem:[#allocation3 + $0x30] sm:$0xff]
        %v842 = vld [vmem:[#allocation3 + $0x38] sm:$0xff]
        %v843 = vmul.f32 %v841, 0.7
        %v844 = vmul.f32 %v842, 0.7
        %v845 = vadd.f32 %v839, %v843
        %v846 = vadd.f32 %v840, %v844
        %847 = vst [vmem:[#allocation3 + $0x30] sm:$0xff] %v845
        %848 = vst [vmem:[#allocation3 + $0x38] sm:$0xff] %v846
        %v849 = vld [vmem:[%s322] sm:$0xff]
        %v850 = vld [vmem:[%s322 + $0x8] sm:$0xff]
        %v851 = vld [vmem:[%s329] sm:$0xff]
        %v852 = vld [vmem:[%s329 + $0x8] sm:$0xff]
        %v853 = vsub.f32 %v849, %v851
        %v854 = vsub.f32 %v850, %v852
        %v855 = vld [vmem:[#allocation3] sm:$0xff]
        %v856 = vld [vmem:[#allocation3 + $0x8] sm:$0xff]
        %v857 = vmul.f32 %v855, 0.3
        %v858 = vmul.f32 %v856, 0.3
        %v859 = vld [vmem:[%s336] sm:$0xff]
        %v860 = vld [vmem:[%s336 + $0x8] sm:$0xff]
        %v861 = vmul.f32 %v859, 0.49
        %v862 = vmul.f32 %v860, 0.49
        %v863 = vadd.f32 %v857, %v861
        %v864 = vadd.f32 %v858, %v862
        %v865 = vsub.f32 %v849, %v863
        %v866 = vsub.f32 %v850, %v864
        %v867 = vmul.f32 %v853, %v853
        %v868 = vmul.f32 %v854, %v854
        %v869 = vmul.f32 %v867, 0.5
        %v870 = vmul.f32 %v868, 0.5
        %v871 = vmul.f32 %v865, %v865
        %v872 = vmul.f32 %v866, %v866
        %v873 = vmul.f32 %v407, %v871
        %v874 = vmul.f32 %v407, %v872
        %v875 = vadd.f32 %v869, %v873
        %v876 = vadd.f32 %v870, %v874
        %v877 = vld [vmem:[#allocation2] sm:$0xff]
        %v878 = vld [vmem:[#allocation2 + $0x8] sm:$0xff]
        %v879 = vadd.f32 %v877, %v875
        %v880 = vadd.f32 %v878, %v876
        %881 = vst [vmem:[#allocation2] sm:$0xff] %v879
        %882 = vst [vmem:[#allocation2 + $0x8] sm:$0xff] %v880
        %v883 = vld [vmem:[%s322 + $0x10] sm:$0xff]
        %v884 = vld [vmem:[%s322 + $0x18] sm:$0xff]
        %v885 = vld [vmem:[%s329 + $0x10] sm:$0xff]
        %v886 = vld [vmem:[%s329 + $0x18] sm:$0xff]
        %v887 = vsub.f32 %v883, %v885
        %v888 = vsub.f32 %v884, %v886
        %v889 = vld [vmem:[#allocation3 + $0x10] sm:$0xff]
        %v890 = vld [vmem:[#allocation3 + $0x18] sm:$0xff]
        %v891 = vmul.f32 %v889, 0.3
        %v892 = vmul.f32 %v890, 0.3
        %v893 = vld [vmem:[%s336 + $0x10] sm:$0xff]
        %v894 = vld [vmem:[%s336 + $0x18] sm:$0xff]
        %v895 = vmul.f32 %v893, 0.49
        %v896 = vmul.f32 %v894, 0.49
        %v897 = vadd.f32 %v891, %v895
        %v898 = vadd.f32 %v892, %v896
        %v899 = vsub.f32 %v883, %v897
        %v900 = vsub.f32 %v884, %v898
        %v901 = vmul.f32 %v887, %v887
        %v902 = vmul.f32 %v888, %v888
        %v903 = vmul.f32 %v901, 0.5
        %v904 = vmul.f32 %v902, 0.5
        %v905 = vmul.f32 %v899, %v899
        %v906 = vmul.f32 %v900, %v900
        %v907 = vmul.f32 %v442, %v905
        %v908 = vmul.f32 %v442, %v906
        %v909 = vadd.f32 %v903, %v907
        %v910 = vadd.f32 %v904, %v908
        %v911 = vld [vmem:[#allocation2 + $0x10] sm:$0xff]
        %v912 = vld [vmem:[#allocation2 + $0x18] sm:$0xff]
        %v913 = vadd.f32 %v911, %v909
        %v914 = vadd.f32 %v912, %v910
        %915 = vst [vmem:[#allocation2 + $0x10] sm:$0xff] %v913
        %916 = vst [vmem:[#allocation2 + $0x18] sm:$0xff] %v914
        %v917 = vld [vmem:[%s322 + $0x20] sm:$0xff]
        %v918 = vld [vmem:[%s322 + $0x28] sm:$0xff]
        %v919 = vld [vmem:[%s329 + $0x20] sm:$0xff]
        %v920 = vld [vmem:[%s329 + $0x28] sm:$0xff]
        %v921 = vsub.f32 %v917, %v919
        %v922 = vsub.f32 %v918, %v920
        %v923 = vld [vmem:[#allocation3 + $0x20] sm:$0xff]
        %v924 = vld [vmem:[#allocation3 + $0x28] sm:$0xff]
        %v925 = vmul.f32 %v923, 0.3
        %v926 = vmul.f32 %v924, 0.3
        %v927 = vld [vmem:[%s336 + $0x20] sm:$0xff]
        %v928 = vld [vmem:[%s336 + $0x28] sm:$0xff]
        %v929 = vmul.f32 %v927, 0.49
        %v930 = vmul.f32 %v928, 0.49
        %v931 = vadd.f32 %v925, %v929
        %v932 = vadd.f32 %v926, %v930
        %v933 = vsub.f32 %v917, %v931
        %v934 = vsub.f32 %v918, %v932
        %v935 = vmul.f32 %v921, %v921
        %v936 = vmul.f32 %v922, %v922
        %v937 = vmul.f32 %v935, 0.5
        %v938 = vmul.f32 %v936, 0.5
        %v939 = vmul.f32 %v933, %v933
        %v940 = vmul.f32 %v934, %v934
        %v941 = vmul.f32 %v479, %v939
        %v942 = vmul.f32 %v479, %v940
        %v943 = vadd.f32 %v937, %v941
        %v944 = vadd.f32 %v938, %v942
        %v945 = vld [vmem:[#allocation2 + $0x20] sm:$0xff]
        %v946 = vld [vmem:[#allocation2 + $0x28] sm:$0xff]
        %v947 = vadd.f32 %v945, %v943
        %v948 = vadd.f32 %v946, %v944
        %949 = vst [vmem:[#allocation2 + $0x20] sm:$0xff] %v947
        %950 = vst [vmem:[#allocation2 + $0x28] sm:$0xff] %v948
        %v951 = vld [vmem:[%s322 + $0x30] sm:$0xff]
        %v952 = vld [vmem:[%s322 + $0x38] sm:$0xff]
        %v953 = vld [vmem:[%s329 + $0x30] sm:$0xff]
        %v954 = vld [vmem:[%s329 + $0x38] sm:$0xff]
        %v955 = vsub.f32 %v951, %v953
        %v956 = vsub.f32 %v952, %v954
        %v957 = vld [vmem:[#allocation3 + $0x30] sm:$0xff]
        %v958 = vld [vmem:[#allocation3 + $0x38] sm:$0xff]
        %v959 = vmul.f32 %v957, 0.3
        %v960 = vmul.f32 %v958, 0.3
        %v961 = vld [vmem:[%s336 + $0x30] sm:$0xff]
        %v962 = vld [vmem:[%s336 + $0x38] sm:$0xff]
        %v963 = vmul.f32 %v961, 0.49
        %v964 = vmul.f32 %v962, 0.49
        %v965 = vadd.f32 %v959, %v963
        %v966 = vadd.f32 %v960, %v964
        %v967 = vsub.f32 %v951, %v965
        %v968 = vsub.f32 %v952, %v966
        %v969 = vmul.f32 %v955, %v955
        %v970 = vmul.f32 %v956, %v956
        %v971 = vmul.f32 %v969, 0.5
        %v972 = vmul.f32 %v970, 0.5
        %v973 = vmul.f32 %v967, %v967
        %v974 = vmul.f32 %v968, %v968
        %v975 = vmul.f32 %v516, %v973
        %v976 = vmul.f32 %v516, %v974
        %v977 = vadd.f32 %v971, %v975
        %v978 = vadd.f32 %v972, %v976
        %v979 = vld [vmem:[#allocation2 + $0x30] sm:$0xff]
        %v980 = vld [vmem:[#allocation2 + $0x38] sm:$0xff]
        %v981 = vadd.f32 %v979, %v977
        %v982 = vadd.f32 %v980, %v978
        %983 = vst [vmem:[#allocation2 + $0x30] sm:$0xff] %v981
        %984 = vst [vmem:[#allocation2 + $0x38] sm:$0xff] %v982
        %v985 = vld [vmem:[#allocation2] sm:$0xff]
        %v986 = vld [vmem:[#allocation2 + $0x8] sm:$0xff]
        %v987 = vadd.f32 %v985, %v986
        %988 = vadd.xlane.f32.xlu0 %v987
        %v989 = vpop.xlane.xlu0 %988
        %v990 = vrot.slane %v989, 4
        %v991 = vadd.f32 %v989, %v990
        %v992 = vrot.slane %v991, 2
        %v993 = vadd.f32 %v991, %v992
        %v994 = vrot.slane %v993, 1
        %v995 = vadd.f32 %v993, %v994
        %s996 = vtos %v995
        %v997 = vld [vmem:[#allocation2 + $0x10] sm:$0xff]
        %v998 = vld [vmem:[#allocation2 + $0x18] sm:$0xff]
        %v999 = vadd.f32 %v997, %v998
        %1000 = vadd.xlane.f32.xlu0 %v999
        %v1001 = vpop.xlane.xlu0 %1000
        %v1002 = vrot.slane %v1001, 4
        %v1003 = vadd.f32 %v1001, %v1002
        %v1004 = vrot.slane %v1003, 2
        %v1005 = vadd.f32 %v1003, %v1004
        %v1006 = vrot.slane %v1005, 1
        %v1007 = vadd.f32 %v1005, %v1006
        %s1008 = vtos %v1007
        %s1009 = sadd.f32 %s996, %s1008
        %v1010 = vld [vmem:[#allocation2 + $0x20] sm:$0xff]
        %v1011 = vld [vmem:[#allocation2 + $0x28] sm:$0xff]
        %v1012 = vadd.f32 %v1010, %v1011
        %1013 = vadd.xlane.f32.xlu0 %v1012
        %v1014 = vpop.xlane.xlu0 %1013
        %v1015 = vrot.slane %v1014, 4
        %v1016 = vadd.f32 %v1014, %v1015
        %v1017 = vrot.slane %v1016, 2
        %v1018 = vadd.f32 %v1016, %v1017
        %v1019 = vrot.slane %v1018, 1
        %v1020 = vadd.f32 %v1018, %v1019
        %s1021 = vtos %v1020
        %s1022 = sadd.f32 %s1009, %s1021
        %v1023 = vld [vmem:[#allocation2 + $0x30] sm:$0xff]
        %v1024 = vld [vmem:[#allocation2 + $0x38] sm:$0xff]
        %v1025 = vadd.f32 %v1023, %v1024
        %1026 = vadd.xlane.f32.xlu0 %v1025
        %v1027 = vpop.xlane.xlu0 %1026
        %v1028 = vrot.slane %v1027, 4
        %v1029 = vadd.f32 %v1027, %v1028
        %v1030 = vrot.slane %v1029, 2
        %v1031 = vadd.f32 %v1029, %v1030
        %v1032 = vrot.slane %v1031, 1
        %v1033 = vadd.f32 %v1031, %v1032
        %s1034 = vtos %v1033
        %s1035 = sadd.f32 %s1022, %s1034
        %v1036 = vstv %s1035
        %1037 = vst [vmem:[%s370] sm:$0x1] %v1036
        %p1038 = scmp.lt.s32.totalorder %s15, 3
        %s1039 = scalar_select %p1038, %s15, 3
        %s1040 = scalar_lea.vmem %s4, %s1039
        // Predicated region
        $region106: #{joints_mse_loss_distillation.1} parent=92 // pred_check
          %p1041 = pneg %p132
        $region107: #{joints_mse_loss_distillation.1} parent=92 // pred_check_branch
          %1043 = sbr.rel (%p1041) target = $region109
        $region108: #{joints_mse_loss_distillation.1} parent=92 // pred_region
          _
        $region109: #{joints_mse_loss_distillation.1} parent=92 // pred_fallthru
          _
      $region93: #{joints_mse_loss_distillation.1} parent=5 // pred_fallthru
        _
      %p1044 = scmp.le.s32.totalorder 2, %s10
      // Predicated region
      $region110: #{joints_mse_loss_distillation.1} parent=5 // pred_check
        %p1045 = pneg %p1044
      $region111: #{joints_mse_loss_distillation.1} parent=5 // pred_check_branch
        %1047 = sbr.rel (%p1045) target = $region113
      $region112: #{joints_mse_loss_distillation.1} parent=5 // pred_region
        %s1048 = ssub.s32 %s10, 2
        // Predicated region
        $region114: #{joints_mse_loss_distillation.1} parent=112 // pred_check
          %p1049 = pneg %p138
        $region115: #{joints_mse_loss_distillation.1} parent=112 // pred_check_branch
          %1051 = sbr.rel (%p1049) target = $region117
        $region116: #{joints_mse_loss_distillation.1} parent=112 // pred_region
          %p1052 = scmp.lt.s32.totalorder %s16, 3
          %s1053 = scalar_select %p1052, %s16, 3
          %s1054 = scalar_lea.vmem %s4, %s1053
        $region117: #{joints_mse_loss_distillation.1} parent=112 // pred_fallthru
          _
      $region113: #{joints_mse_loss_distillation.1} parent=5 // pred_fallthru
        _
    $region6: #{joints_mse_loss_distillation.1} parent=1 // loop_footer
      %s14 = sadd.s32 1, %s10
    $region7: #{joints_mse_loss_distillation.1} parent=1 // loop_footer_branch
      %9 = sbr.rel target = $region3
    $region8: #{joints_mse_loss_distillation.1} parent=1 // loop_exit
      _

</llo_original>
